<compile_context>
chip_gen: v6e
topology: v6e:2x2x1
jax: 0.10.0
libtpu: 0.0.40
codegen_flags: <defaults>
</compile_context>

<pallas_src>
import functools

import jax
import jax.numpy as jnp
from jax.experimental import pallas as pl
from jax.experimental.pallas import tpu as pltpu

LEAKY_SLOPE = 0.01   # nn.LeakyReLU default
IN_EPS = 1e-5        # nn.InstanceNorm3d default eps (affine=False)


# ----------------------------- Pallas kernel -------------------------------

def _downsampling_kernel(x0_ref, w0_ref, b0_ref, w1_ref, w2_ref, m_ref, o_ref,
                         *, tap_shifts, n_valid):
    # x0_ref : (1, Cin*8, Sp)  stride-2 patches, corner-aligned padded flat spatial
    # w0_ref : (Cin,  Cin*8)   stride-2 conv weight (one matmul)
    # b0_ref : (Cin,  1)       stride-2 conv bias
    # w1_ref : (Mid,  27*Cin)  conv1 weight (tap-major columns)
    # w2_ref : (Cout, 27*Mid)  conv2 weight (tap-major columns)
    # m_ref  : (1, Sp) f32     1.0 on valid (non-pad) lanes, 0.0 on pad lanes
    # o_ref  : (1, Cout, Sp)
    maskf = m_ref[...]                                   # (1, Sp)
    inv_n = 1.0 / float(n_valid)

    def im2col(y):
        # Build the (27*C, Sp) tap matrix from lane rotations of the
        # corner-aligned zero-padded activation.  (pltpu.roll would also work;
        # explicit wrap-slice keeps the semantics unambiguous.)
        sp = y.shape[-1]
        y2 = jnp.concatenate([y, y], axis=-1)            # (C, 2*Sp) wrap helper
        return jnp.concatenate([y2[:, s:s + sp] for s in tap_shifts], axis=0)

    def inorm_lrelu(z):
        # InstanceNorm3d (biased var over valid spatial lanes) + LeakyReLU,
        # then re-zero the pad lanes so z stays a valid zero-padded input for
        # the next conv stage.
        mean = jnp.sum(z * maskf, axis=-1, keepdims=True) * inv_n
        d = z - mean
        var = jnp.sum(d * d * maskf, axis=-1, keepdims=True) * inv_n
        zn = d * jax.lax.rsqrt(var + IN_EPS)
        return jnp.maximum(zn, LEAKY_SLOPE * zn) * maskf

    # ---- stage 0: Conv3d(in, in, k=2, s=2) == one matmul (no norm/act) ----
    y0 = jnp.dot(w0_ref[...], x0_ref[0], preferred_element_type=jnp.float32)
    y0 = (y0 + b0_ref[...]) * maskf                      # (Cin, Sp), zero pads

    # ---- stage 1: Conv3d(in, mid, 3, p=1) -> InstanceNorm -> LeakyReLU ----
    # (bias dropped: exactly cancelled by the InstanceNorm mean subtraction)
    z1 = jnp.dot(w1_ref[...], im2col(y0), preferred_element_type=jnp.float32)
    y1 = inorm_lrelu(z1)                                 # (Mid, Sp)

    # ---- stage 2: Conv3d(mid, out, 3, p=1) -> InstanceNorm -> LeakyReLU ---
    z2 = jnp.dot(w2_ref[...], im2col(y1), preferred_element_type=jnp.float32)
    o_ref[0] = inorm_lrelu(z2).astype(o_ref.dtype)


def _downsampling_pallas(x0p, w0r, b0, w1r, w2r, maskf, *, tap_shifts, n_valid):
    n, c8, sp = x0p.shape
    cin = w0r.shape[0]
    mid = w1r.shape[0]
    cout = w2r.shape[0]
    kernel = functools.partial(_downsampling_kernel,
                               tap_shifts=tuple(tap_shifts), n_valid=n_valid)
    return pl.pallas_call(
        kernel,
        out_shape=jax.ShapeDtypeStruct((n, cout, sp), jnp.float32),
        grid_spec=pltpu.PrefetchScalarGridSpec(
            num_scalar_prefetch=0,
            grid=(n,),  # one fused DownSampling per batch element; "parallel"
                        # steps also feed both TensorCores on v7x.
            in_specs=[
                pl.BlockSpec((1, c8, sp), lambda i: (i, 0, 0)),
                pl.BlockSpec((cin, c8), lambda i: (0, 0)),
                pl.BlockSpec((cin, 1), lambda i: (0, 0)),
                pl.BlockSpec((mid, 27 * cin), lambda i: (0, 0)),
                pl.BlockSpec((cout, 27 * mid), lambda i: (0, 0)),
                pl.BlockSpec((1, sp), lambda i: (0, 0)),
            ],
            out_specs=pl.BlockSpec((1, cout, sp), lambda i: (i, 0, 0)),
        ),
        compiler_params=pltpu.CompilerParams(
            dimension_semantics=("parallel",),
            vmem_limit_bytes=48 * 1024 * 1024,   # safe on v5e/v6e/v7x
        ),
    )(x0p, w0r, b0, w1r, w2r, maskf)


# ------------------------------- JAX glue -----------------------------------

def init_downsampling_params(key, in_channels, out_channels):
    def init_conv(k, cin, cout, ks):
        kw_, kb_ = jax.random.split(k)
        fan_in = cin * ks ** 3
        bound = 1.0 / (fan_in ** 0.5)
        w = jax.random.uniform(kw_, (cout, cin, ks, ks, ks), jnp.float32,
                               -bound, bound)
        b = jax.random.uniform(kb_, (cout,), jnp.float32, -bound, bound)
        return w, b

    mid = out_channels // 2
    if in_channels > out_channels:
        mid = in_channels // 2
    k0, k1, k2 = jax.random.split(key, 3)
    w0, b0 = init_conv(k0, in_channels, in_channels, 2)   # strided conv
    w1, b1 = init_conv(k1, in_channels, mid, 3)           # DoubleConv conv1
    w2, b2 = init_conv(k2, mid, out_channels, 3)          # DoubleConv conv2
    return dict(w0=w0, b0=b0, w1=w1, b1=b1, w2=w2, b2=b2)


def downsampling_forward(params, x, storage_dtype=jnp.float32):
    """x: (N, Cin, D, H, W) -> (N, Cout, D//2, H//2, W//2).

    `storage_dtype=jnp.bfloat16` halves the HBM traffic of the kernel inputs
    (weights / patches); all accumulation and norm math stays in f32.
    """
    n, cin, d, h, w = x.shape
    do, ho, wo = d // 2, h // 2, w // 2
    dp, hp, wp = do + 2, ho + 2, wo + 2
    sp = dp * hp * wp

    # Stride-2 k=2 patch shuffle: stride == kernel, so this is a pure
    # relayout (NO data duplication), then corner-aligned zero end-pad.
    xp = x.reshape(n, cin, do, 2, ho, 2, wo, 2)
    xp = xp.transpose(0, 1, 3, 5, 7, 2, 4, 6).reshape(n, cin * 8, do, ho, wo)
    xp = jnp.pad(xp, ((0, 0), (0, 0), (0, 2), (0, 2), (0, 2)))
    xp = xp.reshape(n, cin * 8, sp).astype(storage_dtype)

    # Weights reshaped so each conv is a single (Cout, T*Cin) matmul.
    mid = params['w1'].shape[0]
    cout = params['w2'].shape[0]
    w0r = params['w0'].reshape(cin, cin * 8).astype(storage_dtype)
    b0 = params['b0'].reshape(cin, 1).astype(jnp.float32)
    w1r = params['w1'].transpose(0, 2, 3, 4, 1).reshape(mid, 27 * cin)
    w2r = params['w2'].transpose(0, 2, 3, 4, 1).reshape(cout, 27 * mid)
    w1r = w1r.astype(storage_dtype)
    w2r = w2r.astype(storage_dtype)
    # params['b1'], params['b2'] are intentionally unused: they are cancelled
    # exactly by the InstanceNorm mean subtraction.

    # Validity mask over the corner-aligned padded flat spatial axis.
    maskf = jnp.pad(jnp.ones((do, ho, wo), jnp.float32),
                    ((0, 2), (0, 2), (0, 2))).reshape(1, sp)

    # Lane shifts implementing the 27 taps of a 3x3x3 / pad=1 conv in the
    # corner-aligned padded flat layout.
    tap_shifts = tuple(
        ((kd - 1) * hp * wp + (kh - 1) * wp + (kw - 1)) % sp
        for kd in range(3) for kh in range(3) for kw in range(3))

    out = _downsampling_pallas(xp, w0r, b0, w1r, w2r, maskf,
                               tap_shifts=tap_shifts, n_valid=do * ho * wo)
    out = out.reshape(n, cout, dp, hp, wp)[:, :, :do, :ho, :wo]
    return out


# ------------------------- pure-JAX reference check --------------------------

def _reference_forward(params, x):
    def conv(x, w, b, stride, pad):
        y = jax.lax.conv_general_dilated(
            x, w, window_strides=(stride,) * 3, padding=[(pad, pad)] * 3,
            dimension_numbers=('NCDHW', 'OIDHW', 'NCDHW'))
        return y + b.reshape(1, -1, 1, 1, 1)

    def in_lrelu(y):
        mean = y.mean(axis=(2, 3, 4), keepdims=True)
        var = ((y - mean) ** 2).mean(axis=(2, 3, 4), keepdims=True)
        y = (y - mean) / jnp.sqrt(var + IN_EPS)
        return jnp.where(y >= 0, y, LEAKY_SLOPE * y)

    y = conv(x, params['w0'], params['b0'], 2, 0)
    y = in_lrelu(conv(y, params['w1'], params['b1'], 1, 1))
    y = in_lrelu(conv(y, params['w2'], params['b2'], 1, 1))
    return y


# ---------------------------------- main ------------------------------------

if __name__ == "__main__":
    key = jax.random.PRNGKey(0)
    k_param, k_x = jax.random.split(key)

    N, C_IN, C_OUT, D = 2, 4, 8, 8          # small but representative shapes
    x = jax.random.normal(k_x, (N, C_IN, D, D, D), jnp.float32)

    params = init_downsampling_params(k_param, C_IN, C_OUT)

    out = jax.jit(downsampling_forward)(params, x)
    out = jax.block_until_ready(out)

    assert out.shape == (N, C_OUT, D // 2, D // 2, D // 2), out.shape

    ref = _reference_forward(params, x)
    max_err = float(jnp.max(jnp.abs(out - ref)))
    assert jnp.allclose(out, ref, atol=2e-4, rtol=2e-4), max_err

    print("KERNEL_OK")
</pallas_src>

<mosaic_0001>
module attributes {stable_mosaic.version = 11 : i64} {
  func.func @_downsampling_kernel(%arg0: i32, %arg1: memref<1x32x216xf32, #tpu.memory_space<vmem>>, %arg2: memref<4x32xf32, #tpu.memory_space<vmem>>, %arg3: memref<4x1xf32, #tpu.memory_space<vmem>>, %arg4: memref<4x108xf32, #tpu.memory_space<vmem>>, %arg5: memref<8x108xf32, #tpu.memory_space<vmem>>, %arg6: memref<1x216xf32, #tpu.memory_space<vmem>>, %arg7: memref<1x8x216xf32, #tpu.memory_space<vmem>>) attributes {dimension_semantics = [#tpu.dimension_semantics<parallel>], iteration_bounds = array<i64: 2>, scalar_prefetch = 0 : i64, scratch_operands = 0 : i64, tpu.core_type = #tpu.core_type<tc>, window_params = [{transform_indices = @transform_0, window_bounds = array<i64: 1, 32, 216>}, {pipeline_mode = #tpu.pipeline_mode<synchronous>, transform_indices = @transform_1, window_bounds = array<i64: 4, 32>}, {pipeline_mode = #tpu.pipeline_mode<synchronous>, transform_indices = @transform_2, window_bounds = array<i64: 4, 1>}, {pipeline_mode = #tpu.pipeline_mode<synchronous>, transform_indices = @transform_3, window_bounds = array<i64: 4, 108>}, {pipeline_mode = #tpu.pipeline_mode<synchronous>, transform_indices = @transform_4, window_bounds = array<i64: 8, 108>}, {pipeline_mode = #tpu.pipeline_mode<synchronous>, transform_indices = @transform_5, window_bounds = array<i64: 1, 216>}, {transform_indices = @transform_6, window_bounds = array<i64: 1, 8, 216>}]} {
    %c0 = arith.constant 0 : index
    %c0_0 = arith.constant 0 : index
    %0 = vector.load %arg6[%c0, %c0_0] : memref<1x216xf32, #tpu.memory_space<vmem>>, vector<1x216xf32>
    %c0_1 = arith.constant 0 : index
    %c0_2 = arith.constant 0 : index
    %1 = vector.load %arg2[%c0_1, %c0_2] : memref<4x32xf32, #tpu.memory_space<vmem>>, vector<4x32xf32>
    %c0_3 = arith.constant 0 : index
    %c0_4 = arith.constant 0 : index
    %c0_5 = arith.constant 0 : index
    %2 = vector.load %arg1[%c0_3, %c0_4, %c0_5] : memref<1x32x216xf32, #tpu.memory_space<vmem>>, vector<1x32x216xf32>
    %3 = vector.shape_cast %2 : vector<1x32x216xf32> to vector<32x216xf32>
    %cst = arith.constant dense<0.000000e+00> : vector<4x216xf32>
    %4 = tpu.matmul %1, %3, %cst {dimension_numbers = #tpu.dot_dimension_numbers<[1], [0], [0], [1], [0, 0, 1, 1], [], []>} : vector<4x32xf32>, vector<32x216xf32>, vector<4x216xf32> -> vector<4x216xf32>
    %c0_6 = arith.constant 0 : index
    %c0_7 = arith.constant 0 : index
    %5 = vector.load %arg3[%c0_6, %c0_7] : memref<4x1xf32, #tpu.memory_space<vmem>>, vector<4x1xf32>
    %6 = vector.broadcast %5 : vector<4x1xf32> to vector<4x216xf32>
    %7 = arith.addf %4, %6 : vector<4x216xf32>
    %8 = vector.broadcast %0 : vector<1x216xf32> to vector<4x216xf32>
    %9 = arith.mulf %7, %8 : vector<4x216xf32>
    %c0_8 = arith.constant 0 : index
    %c0_9 = arith.constant 0 : index
    %10 = vector.load %arg4[%c0_8, %c0_9] : memref<4x108xf32, #tpu.memory_space<vmem>>, vector<4x108xf32>
    %11 = tpu.concatenate %9, %9 in 1 : vector<4x216xf32>, vector<4x216xf32> -> vector<4x432xf32>
    %12 = vector.extract_strided_slice %11 {offsets = [0, 173], sizes = [4, 216], strides = [1, 1]} : vector<4x432xf32> to vector<4x216xf32>
    %13 = vector.extract_strided_slice %11 {offsets = [0, 174], sizes = [4, 216], strides = [1, 1]} : vector<4x432xf32> to vector<4x216xf32>
    %14 = vector.extract_strided_slice %11 {offsets = [0, 175], sizes = [4, 216], strides = [1, 1]} : vector<4x432xf32> to vector<4x216xf32>
    %15 = vector.extract_strided_slice %11 {offsets = [0, 179], sizes = [4, 216], strides = [1, 1]} : vector<4x432xf32> to vector<4x216xf32>
    %16 = vector.extract_strided_slice %11 {offsets = [0, 180], sizes = [4, 216], strides = [1, 1]} : vector<4x432xf32> to vector<4x216xf32>
    %17 = vector.extract_strided_slice %11 {offsets = [0, 181], sizes = [4, 216], strides = [1, 1]} : vector<4x432xf32> to vector<4x216xf32>
    %18 = vector.extract_strided_slice %11 {offsets = [0, 185], sizes = [4, 216], strides = [1, 1]} : vector<4x432xf32> to vector<4x216xf32>
    %19 = vector.extract_strided_slice %11 {offsets = [0, 186], sizes = [4, 216], strides = [1, 1]} : vector<4x432xf32> to vector<4x216xf32>
    %20 = vector.extract_strided_slice %11 {offsets = [0, 187], sizes = [4, 216], strides = [1, 1]} : vector<4x432xf32> to vector<4x216xf32>
    %21 = vector.extract_strided_slice %11 {offsets = [0, 209], sizes = [4, 216], strides = [1, 1]} : vector<4x432xf32> to vector<4x216xf32>
    %22 = vector.extract_strided_slice %11 {offsets = [0, 210], sizes = [4, 216], strides = [1, 1]} : vector<4x432xf32> to vector<4x216xf32>
    %23 = vector.extract_strided_slice %11 {offsets = [0, 211], sizes = [4, 216], strides = [1, 1]} : vector<4x432xf32> to vector<4x216xf32>
    %24 = vector.extract_strided_slice %11 {offsets = [0, 215], sizes = [4, 216], strides = [1, 1]} : vector<4x432xf32> to vector<4x216xf32>
    %25 = vector.extract_strided_slice %11 {offsets = [0, 0], sizes = [4, 216], strides = [1, 1]} : vector<4x432xf32> to vector<4x216xf32>
    %26 = vector.extract_strided_slice %11 {offsets = [0, 1], sizes = [4, 216], strides = [1, 1]} : vector<4x432xf32> to vector<4x216xf32>
    %27 = vector.extract_strided_slice %11 {offsets = [0, 5], sizes = [4, 216], strides = [1, 1]} : vector<4x432xf32> to vector<4x216xf32>
    %28 = vector.extract_strided_slice %11 {offsets = [0, 6], sizes = [4, 216], strides = [1, 1]} : vector<4x432xf32> to vector<4x216xf32>
    %29 = vector.extract_strided_slice %11 {offsets = [0, 7], sizes = [4, 216], strides = [1, 1]} : vector<4x432xf32> to vector<4x216xf32>
    %30 = vector.extract_strided_slice %11 {offsets = [0, 29], sizes = [4, 216], strides = [1, 1]} : vector<4x432xf32> to vector<4x216xf32>
    %31 = vector.extract_strided_slice %11 {offsets = [0, 30], sizes = [4, 216], strides = [1, 1]} : vector<4x432xf32> to vector<4x216xf32>
    %32 = vector.extract_strided_slice %11 {offsets = [0, 31], sizes = [4, 216], strides = [1, 1]} : vector<4x432xf32> to vector<4x216xf32>
    %33 = vector.extract_strided_slice %11 {offsets = [0, 35], sizes = [4, 216], strides = [1, 1]} : vector<4x432xf32> to vector<4x216xf32>
    %34 = vector.extract_strided_slice %11 {offsets = [0, 36], sizes = [4, 216], strides = [1, 1]} : vector<4x432xf32> to vector<4x216xf32>
    %35 = vector.extract_strided_slice %11 {offsets = [0, 37], sizes = [4, 216], strides = [1, 1]} : vector<4x432xf32> to vector<4x216xf32>
    %36 = vector.extract_strided_slice %11 {offsets = [0, 41], sizes = [4, 216], strides = [1, 1]} : vector<4x432xf32> to vector<4x216xf32>
    %37 = vector.extract_strided_slice %11 {offsets = [0, 42], sizes = [4, 216], strides = [1, 1]} : vector<4x432xf32> to vector<4x216xf32>
    %38 = vector.extract_strided_slice %11 {offsets = [0, 43], sizes = [4, 216], strides = [1, 1]} : vector<4x432xf32> to vector<4x216xf32>
    %39 = tpu.concatenate %12, %13, %14, %15, %16, %17, %18, %19, %20, %21, %22, %23, %24, %25, %26, %27 in 0 : vector<4x216xf32>, vector<4x216xf32>, vector<4x216xf32>, vector<4x216xf32>, vector<4x216xf32>, vector<4x216xf32>, vector<4x216xf32>, vector<4x216xf32>, vector<4x216xf32>, vector<4x216xf32>, vector<4x216xf32>, vector<4x216xf32>, vector<4x216xf32>, vector<4x216xf32>, vector<4x216xf32>, vector<4x216xf32> -> vector<64x216xf32>
    %40 = tpu.concatenate %28, %29, %30, %31, %32, %33, %34, %35, %36, %37, %38 in 0 : vector<4x216xf32>, vector<4x216xf32>, vector<4x216xf32>, vector<4x216xf32>, vector<4x216xf32>, vector<4x216xf32>, vector<4x216xf32>, vector<4x216xf32>, vector<4x216xf32>, vector<4x216xf32>, vector<4x216xf32> -> vector<44x216xf32>
    %41 = tpu.concatenate %39, %40 in 0 : vector<64x216xf32>, vector<44x216xf32> -> vector<108x216xf32>
    %cst_10 = arith.constant dense<0.000000e+00> : vector<4x216xf32>
    %42 = tpu.matmul %10, %41, %cst_10 {dimension_numbers = #tpu.dot_dimension_numbers<[1], [0], [0], [1], [0, 0, 1, 1], [], []>} : vector<4x108xf32>, vector<108x216xf32>, vector<4x216xf32> -> vector<4x216xf32>
    %43 = vector.broadcast %0 : vector<1x216xf32> to vector<4x216xf32>
    %44 = arith.mulf %42, %43 : vector<4x216xf32>
    %cst_11 = arith.constant dense<0.000000e+00> : vector<4xf32>
    %45 = vector.multi_reduction <add>, %44, %cst_11 [1] : vector<4x216xf32> to vector<4xf32>
    %46 = vector.shape_cast %45 : vector<4xf32> to vector<4x1xf32>
    %cst_12 = arith.constant 1.562500e-02 : f32
    %47 = vector.broadcast %cst_12 : f32 to vector<4x1xf32>
    %48 = arith.mulf %46, %47 : vector<4x1xf32>
    %49 = vector.broadcast %48 : vector<4x1xf32> to vector<4x216xf32>
    %50 = arith.subf %42, %49 : vector<4x216xf32>
    %51 = arith.mulf %50, %50 : vector<4x216xf32>
    %52 = vector.broadcast %0 : vector<1x216xf32> to vector<4x216xf32>
    %53 = arith.mulf %51, %52 : vector<4x216xf32>
    %cst_13 = arith.constant dense<0.000000e+00> : vector<4xf32>
    %54 = vector.multi_reduction <add>, %53, %cst_13 [1] : vector<4x216xf32> to vector<4xf32>
    %55 = vector.shape_cast %54 : vector<4xf32> to vector<4x1xf32>
    %cst_14 = arith.constant 1.562500e-02 : f32
    %56 = vector.broadcast %cst_14 : f32 to vector<4x1xf32>
    %57 = arith.mulf %55, %56 : vector<4x1xf32>
    %cst_15 = arith.constant 9.99999974E-6 : f32
    %58 = vector.broadcast %cst_15 : f32 to vector<4x1xf32>
    %59 = arith.addf %57, %58 : vector<4x1xf32>
    %60 = math.rsqrt %59 : vector<4x1xf32>
    %61 = vector.broadcast %60 : vector<4x1xf32> to vector<4x216xf32>
    %62 = arith.mulf %50, %61 : vector<4x216xf32>
    %cst_16 = arith.constant 0.00999999977 : f32
    %63 = vector.broadcast %cst_16 : f32 to vector<4x216xf32>
    %64 = arith.mulf %63, %62 : vector<4x216xf32>
    %65 = arith.maximumf %62, %64 : vector<4x216xf32>
    %66 = vector.broadcast %0 : vector<1x216xf32> to vector<4x216xf32>
    %67 = arith.mulf %65, %66 : vector<4x216xf32>
    %c0_17 = arith.constant 0 : index
    %c0_18 = arith.constant 0 : index
    %68 = vector.load %arg5[%c0_17, %c0_18] : memref<8x108xf32, #tpu.memory_space<vmem>>, vector<8x108xf32>
    %69 = tpu.concatenate %67, %67 in 1 : vector<4x216xf32>, vector<4x216xf32> -> vector<4x432xf32>
    %70 = vector.extract_strided_slice %69 {offsets = [0, 173], sizes = [4, 216], strides = [1, 1]} : vector<4x432xf32> to vector<4x216xf32>
    %71 = vector.extract_strided_slice %69 {offsets = [0, 174], sizes = [4, 216], strides = [1, 1]} : vector<4x432xf32> to vector<4x216xf32>
    %72 = vector.extract_strided_slice %69 {offsets = [0, 175], sizes = [4, 216], strides = [1, 1]} : vector<4x432xf32> to vector<4x216xf32>
    %73 = vector.extract_strided_slice %69 {offsets = [0, 179], sizes = [4, 216], strides = [1, 1]} : vector<4x432xf32> to vector<4x216xf32>
    %74 = vector.extract_strided_slice %69 {offsets = [0, 180], sizes = [4, 216], strides = [1, 1]} : vector<4x432xf32> to vector<4x216xf32>
    %75 = vector.extract_strided_slice %69 {offsets = [0, 181], sizes = [4, 216], strides = [1, 1]} : vector<4x432xf32> to vector<4x216xf32>
    %76 = vector.extract_strided_slice %69 {offsets = [0, 185], sizes = [4, 216], strides = [1, 1]} : vector<4x432xf32> to vector<4x216xf32>
    %77 = vector.extract_strided_slice %69 {offsets = [0, 186], sizes = [4, 216], strides = [1, 1]} : vector<4x432xf32> to vector<4x216xf32>
    %78 = vector.extract_strided_slice %69 {offsets = [0, 187], sizes = [4, 216], strides = [1, 1]} : vector<4x432xf32> to vector<4x216xf32>
    %79 = vector.extract_strided_slice %69 {offsets = [0, 209], sizes = [4, 216], strides = [1, 1]} : vector<4x432xf32> to vector<4x216xf32>
    %80 = vector.extract_strided_slice %69 {offsets = [0, 210], sizes = [4, 216], strides = [1, 1]} : vector<4x432xf32> to vector<4x216xf32>
    %81 = vector.extract_strided_slice %69 {offsets = [0, 211], sizes = [4, 216], strides = [1, 1]} : vector<4x432xf32> to vector<4x216xf32>
    %82 = vector.extract_strided_slice %69 {offsets = [0, 215], sizes = [4, 216], strides = [1, 1]} : vector<4x432xf32> to vector<4x216xf32>
    %83 = vector.extract_strided_slice %69 {offsets = [0, 0], sizes = [4, 216], strides = [1, 1]} : vector<4x432xf32> to vector<4x216xf32>
    %84 = vector.extract_strided_slice %69 {offsets = [0, 1], sizes = [4, 216], strides = [1, 1]} : vector<4x432xf32> to vector<4x216xf32>
    %85 = vector.extract_strided_slice %69 {offsets = [0, 5], sizes = [4, 216], strides = [1, 1]} : vector<4x432xf32> to vector<4x216xf32>
    %86 = vector.extract_strided_slice %69 {offsets = [0, 6], sizes = [4, 216], strides = [1, 1]} : vector<4x432xf32> to vector<4x216xf32>
    %87 = vector.extract_strided_slice %69 {offsets = [0, 7], sizes = [4, 216], strides = [1, 1]} : vector<4x432xf32> to vector<4x216xf32>
    %88 = vector.extract_strided_slice %69 {offsets = [0, 29], sizes = [4, 216], strides = [1, 1]} : vector<4x432xf32> to vector<4x216xf32>
    %89 = vector.extract_strided_slice %69 {offsets = [0, 30], sizes = [4, 216], strides = [1, 1]} : vector<4x432xf32> to vector<4x216xf32>
    %90 = vector.extract_strided_slice %69 {offsets = [0, 31], sizes = [4, 216], strides = [1, 1]} : vector<4x432xf32> to vector<4x216xf32>
    %91 = vector.extract_strided_slice %69 {offsets = [0, 35], sizes = [4, 216], strides = [1, 1]} : vector<4x432xf32> to vector<4x216xf32>
    %92 = vector.extract_strided_slice %69 {offsets = [0, 36], sizes = [4, 216], strides = [1, 1]} : vector<4x432xf32> to vector<4x216xf32>
    %93 = vector.extract_strided_slice %69 {offsets = [0, 37], sizes = [4, 216], strides = [1, 1]} : vector<4x432xf32> to vector<4x216xf32>
    %94 = vector.extract_strided_slice %69 {offsets = [0, 41], sizes = [4, 216], strides = [1, 1]} : vector<4x432xf32> to vector<4x216xf32>
    %95 = vector.extract_strided_slice %69 {offsets = [0, 42], sizes = [4, 216], strides = [1, 1]} : vector<4x432xf32> to vector<4x216xf32>
    %96 = vector.extract_strided_slice %69 {offsets = [0, 43], sizes = [4, 216], strides = [1, 1]} : vector<4x432xf32> to vector<4x216xf32>
    %97 = tpu.concatenate %70, %71, %72, %73, %74, %75, %76, %77, %78, %79, %80, %81, %82, %83, %84, %85 in 0 : vector<4x216xf32>, vector<4x216xf32>, vector<4x216xf32>, vector<4x216xf32>, vector<4x216xf32>, vector<4x216xf32>, vector<4x216xf32>, vector<4x216xf32>, vector<4x216xf32>, vector<4x216xf32>, vector<4x216xf32>, vector<4x216xf32>, vector<4x216xf32>, vector<4x216xf32>, vector<4x216xf32>, vector<4x216xf32> -> vector<64x216xf32>
    %98 = tpu.concatenate %86, %87, %88, %89, %90, %91, %92, %93, %94, %95, %96 in 0 : vector<4x216xf32>, vector<4x216xf32>, vector<4x216xf32>, vector<4x216xf32>, vector<4x216xf32>, vector<4x216xf32>, vector<4x216xf32>, vector<4x216xf32>, vector<4x216xf32>, vector<4x216xf32>, vector<4x216xf32> -> vector<44x216xf32>
    %99 = tpu.concatenate %97, %98 in 0 : vector<64x216xf32>, vector<44x216xf32> -> vector<108x216xf32>
    %cst_19 = arith.constant dense<0.000000e+00> : vector<8x216xf32>
    %100 = tpu.matmul %68, %99, %cst_19 {dimension_numbers = #tpu.dot_dimension_numbers<[1], [0], [0], [1], [0, 0, 1, 1], [], []>} : vector<8x108xf32>, vector<108x216xf32>, vector<8x216xf32> -> vector<8x216xf32>
    %101 = vector.broadcast %0 : vector<1x216xf32> to vector<8x216xf32>
    %102 = arith.mulf %100, %101 : vector<8x216xf32>
    %cst_20 = arith.constant dense<0.000000e+00> : vector<8xf32>
    %103 = vector.multi_reduction <add>, %102, %cst_20 [1] : vector<8x216xf32> to vector<8xf32>
    %104 = vector.shape_cast %103 : vector<8xf32> to vector<8x1xf32>
    %cst_21 = arith.constant 1.562500e-02 : f32
    %105 = vector.broadcast %cst_21 : f32 to vector<8x1xf32>
    %106 = arith.mulf %104, %105 : vector<8x1xf32>
    %107 = vector.broadcast %106 : vector<8x1xf32> to vector<8x216xf32>
    %108 = arith.subf %100, %107 : vector<8x216xf32>
    %109 = arith.mulf %108, %108 : vector<8x216xf32>
    %110 = vector.broadcast %0 : vector<1x216xf32> to vector<8x216xf32>
    %111 = arith.mulf %109, %110 : vector<8x216xf32>
    %cst_22 = arith.constant dense<0.000000e+00> : vector<8xf32>
    %112 = vector.multi_reduction <add>, %111, %cst_22 [1] : vector<8x216xf32> to vector<8xf32>
    %113 = vector.shape_cast %112 : vector<8xf32> to vector<8x1xf32>
    %cst_23 = arith.constant 1.562500e-02 : f32
    %114 = vector.broadcast %cst_23 : f32 to vector<8x1xf32>
    %115 = arith.mulf %113, %114 : vector<8x1xf32>
    %cst_24 = arith.constant 9.99999974E-6 : f32
    %116 = vector.broadcast %cst_24 : f32 to vector<8x1xf32>
    %117 = arith.addf %115, %116 : vector<8x1xf32>
    %118 = math.rsqrt %117 : vector<8x1xf32>
    %119 = vector.broadcast %118 : vector<8x1xf32> to vector<8x216xf32>
    %120 = arith.mulf %108, %119 : vector<8x216xf32>
    %cst_25 = arith.constant 0.00999999977 : f32
    %121 = vector.broadcast %cst_25 : f32 to vector<8x216xf32>
    %122 = arith.mulf %121, %120 : vector<8x216xf32>
    %123 = arith.maximumf %120, %122 : vector<8x216xf32>
    %124 = vector.broadcast %0 : vector<1x216xf32> to vector<8x216xf32>
    %125 = arith.mulf %123, %124 : vector<8x216xf32>
    %c0_26 = arith.constant 0 : index
    %c0_27 = arith.constant 0 : index
    %c0_28 = arith.constant 0 : index
    %126 = vector.load %arg7[%c0_26, %c0_27, %c0_28] : memref<1x8x216xf32, #tpu.memory_space<vmem>>, vector<1x8x216xf32>
    %127 = vector.shape_cast %126 : vector<1x8x216xf32> to vector<8x216xf32>
    %128 = vector.shape_cast %125 : vector<8x216xf32> to vector<1x8x216xf32>
    tpu.vector_store %arg7[%c0_26, %c0_27, %c0_28], %128 {strides = array<i32>} : memref<1x8x216xf32, #tpu.memory_space<vmem>>, vector<1x8x216xf32>,
    return
  }
  func.func @transform_0(%arg0: i32) -> (i32, i32, i32) {
    %c0_i32 = arith.constant 0 : i32
    %c0_i32_0 = arith.constant 0 : i32
    %c0_i32_1 = arith.constant 0 : i32
    return %arg0, %c0_i32, %c0_i32_0 : i32, i32, i32
  }
  func.func @transform_1(%arg0: i32) -> (i32, i32) {
    %c0_i32 = arith.constant 0 : i32
    %c0_i32_0 = arith.constant 0 : i32
    %c0_i32_1 = arith.constant 0 : i32
    return %c0_i32, %c0_i32_0 : i32, i32
  }
  func.func @transform_2(%arg0: i32) -> (i32, i32) {
    %c0_i32 = arith.constant 0 : i32
    %c0_i32_0 = arith.constant 0 : i32
    %c0_i32_1 = arith.constant 0 : i32
    return %c0_i32, %c0_i32_0 : i32, i32
  }
  func.func @transform_3(%arg0: i32) -> (i32, i32) {
    %c0_i32 = arith.constant 0 : i32
    %c0_i32_0 = arith.constant 0 : i32
    %c0_i32_1 = arith.constant 0 : i32
    return %c0_i32, %c0_i32_0 : i32, i32
  }
  func.func @transform_4(%arg0: i32) -> (i32, i32) {
    %c0_i32 = arith.constant 0 : i32
    %c0_i32_0 = arith.constant 0 : i32
    %c0_i32_1 = arith.constant 0 : i32
    return %c0_i32, %c0_i32_0 : i32, i32
  }
  func.func @transform_5(%arg0: i32) -> (i32, i32) {
    %c0_i32 = arith.constant 0 : i32
    %c0_i32_0 = arith.constant 0 : i32
    %c0_i32_1 = arith.constant 0 : i32
    return %c0_i32, %c0_i32_0 : i32, i32
  }
  func.func @transform_6(%arg0: i32) -> (i32, i32, i32) {
    %c0_i32 = arith.constant 0 : i32
    %c0_i32_0 = arith.constant 0 : i32
    %c0_i32_1 = arith.constant 0 : i32
    return %arg0, %c0_i32, %c0_i32_0 : i32, i32, i32
  }
}

</mosaic_0001>

<llo_original>
// kernel: downsampling_forward.1
$region0: #{downsampling_forward.1}
  #allocation0 [shape = 'u32[]', space=smem, size = 0x4, offset = 0x4, fixed_abs, tag = 'smem constant byte address 0x4 - core index']
  #allocation1 [shape = 'u32[144,128]{1,0:T(1,128)}', space=vmem, size = 0x12000, scoped, tag = 'internal scratch']
  %s0 = inlined_call_operand.vmem [shape: f32[2,32,216], index: 0, kind: input, shape index: {}]
  %s1 = inlined_call_operand.vmem [shape: f32[4,32], index: 1, kind: input, shape index: {}]
  %s2 = inlined_call_operand.vmem [shape: f32[4,1], index: 2, kind: input, shape index: {}]
  %s3 = inlined_call_operand.vmem [shape: f32[4,108], index: 3, kind: input, shape index: {}]
  %s4 = inlined_call_operand.vmem [shape: f32[8,108], index: 4, kind: input, shape index: {}]
  %s5 = inlined_call_operand.vmem [shape: f32[1,216], index: 5, kind: input, shape index: {}]
  %s6 = inlined_call_operand.vmem [shape: f32[2,8,216], index: 6, kind: output, shape index: {}]
  %s7 = sld [smem:[#allocation0]]
  $region57: #{downsampling_forward.1} parent=0
    _
  %s9 = ssub.s32 1, %s7
  %s10 = scalar_select 0, %s9, %s7
  loop: start=0, step=1, limit=4
  $region2: #{downsampling_forward.1} parent=0 // loop_pre_header
    _
  $region3: #{downsampling_forward.1} parent=0 // loop_header
    %s12 = sphi 0, %s16
    %p13 = scmp.ge.s32.totalorder %s12, 4
    %s22 = sphi 0, %s24
    %s25 = sphi 0, %s22
    %s26 = sphi 0, %s25
    %s42 = sphi 0, %s26
    %s46 = sphi 0, %s46
    %s48 = sphi 0, %s46
    %s49 = sphi 0, %s48
    %s63 = sphi 0, %s49
    %s67 = sphi 0, %s67
    %s69 = sphi 0, %s67
    %s70 = sphi 0, %s69
    %s84 = sphi 0, %s70
    %s88 = sphi 0, %s88
    %s90 = sphi 0, %s88
    %s91 = sphi 0, %s90
    %s105 = sphi 0, %s91
    %s109 = sphi 0, %s109
    %s111 = sphi 0, %s109
    %s112 = sphi 0, %s111
    %s126 = sphi 0, %s112
    %s130 = sphi 0, %s130
    %s132 = sphi 0, %s130
    %s133 = sphi 0, %s132
    %s147 = sphi 0, %s133
    %s153 = sphi 0, %s155
    %s156 = sphi 0, %s153
    %s157 = sphi 0, %s156
    %s173 = sphi 0, %s157
  $region4: #{downsampling_forward.1} parent=0 // loop_header_branch
    %15 = sbr.rel (%p13) target = $region8
  $region5: #{downsampling_forward.1} parent=0 // loop_body
    %s17 = ssub.s32 %s12, 1
    %s18 = ssub.s32 %s12, 2
    %s19 = sadd.s32 %s12, 1
    %s20 = ssub.s32 %s12, %s19
    %p21 = scmp.eq.s32.totalorder %s20, 0
    %s23 = sadd.s32 %s22, 1
    %s24 = scalar_select %p21, %s22, %s23
    %p27 = pneg %p21
    %p28 = scmp.eq.s32.totalorder %s12, 1
    %p29 = por %p27, %p28
    %p30 = scmp.ne.s32.totalorder %s22, %s25
    %p31 = scmp.eq.s32.totalorder %s12, 0
    %p32 = por %p30, %p31
    %p33 = scmp.ne.s32.totalorder %s22, %s25
    %p34 = scmp.eq.s32.totalorder %s17, 1
    %p35 = por %p33, %p34
    %p36 = scmp.ne.s32.totalorder %s25, %s26
    %p37 = scmp.eq.s32.totalorder %s17, 0
    %p38 = por %p36, %p37
    %p39 = scmp.ne.s32.totalorder %s25, %s26
    %p40 = scmp.eq.s32.totalorder %s18, 1
    %p41 = por %p39, %p40
    %p43 = scmp.ne.s32.totalorder %s26, %s42
    %p44 = scmp.eq.s32.totalorder %s18, 0
    %p45 = por %p43, %p44
    %s47 = sadd.s32 %s46, 1
    %p50 = scmp.eq.s32.totalorder %s12, 1
    %p51 = scmp.ne.s32.totalorder %s46, %s48
    %p52 = scmp.eq.s32.totalorder %s12, 0
    %p53 = por %p51, %p52
    %p54 = scmp.ne.s32.totalorder %s46, %s48
    %p55 = scmp.eq.s32.totalorder %s17, 1
    %p56 = por %p54, %p55
    %p57 = scmp.ne.s32.totalorder %s48, %s49
    %p58 = scmp.eq.s32.totalorder %s17, 0
    %p59 = por %p57, %p58
    %p60 = scmp.ne.s32.totalorder %s48, %s49
    %p61 = scmp.eq.s32.totalorder %s18, 1
    %p62 = por %p60, %p61
    %p64 = scmp.ne.s32.totalorder %s49, %s63
    %p65 = scmp.eq.s32.totalorder %s18, 0
    %p66 = por %p64, %p65
    %s68 = sadd.s32 %s67, 1
    %p71 = scmp.eq.s32.totalorder %s12, 1
    %p72 = scmp.ne.s32.totalorder %s67, %s69
    %p73 = scmp.eq.s32.totalorder %s12, 0
    %p74 = por %p72, %p73
    %p75 = scmp.ne.s32.totalorder %s67, %s69
    %p76 = scmp.eq.s32.totalorder %s17, 1
    %p77 = por %p75, %p76
    %p78 = scmp.ne.s32.totalorder %s69, %s70
    %p79 = scmp.eq.s32.totalorder %s17, 0
    %p80 = por %p78, %p79
    %p81 = scmp.ne.s32.totalorder %s69, %s70
    %p82 = scmp.eq.s32.totalorder %s18, 1
    %p83 = por %p81, %p82
    %p85 = scmp.ne.s32.totalorder %s70, %s84
    %p86 = scmp.eq.s32.totalorder %s18, 0
    %p87 = por %p85, %p86
    %s89 = sadd.s32 %s88, 1
    %p92 = scmp.eq.s32.totalorder %s12, 1
    %p93 = scmp.ne.s32.totalorder %s88, %s90
    %p94 = scmp.eq.s32.totalorder %s12, 0
    %p95 = por %p93, %p94
    %p96 = scmp.ne.s32.totalorder %s88, %s90
    %p97 = scmp.eq.s32.totalorder %s17, 1
    %p98 = por %p96, %p97
    %p99 = scmp.ne.s32.totalorder %s90, %s91
    %p100 = scmp.eq.s32.totalorder %s17, 0
    %p101 = por %p99, %p100
    %p102 = scmp.ne.s32.totalorder %s90, %s91
    %p103 = scmp.eq.s32.totalorder %s18, 1
    %p104 = por %p102, %p103
    %p106 = scmp.ne.s32.totalorder %s91, %s105
    %p107 = scmp.eq.s32.totalorder %s18, 0
    %p108 = por %p106, %p107
    %s110 = sadd.s32 %s109, 1
    %p113 = scmp.eq.s32.totalorder %s12, 1
    %p114 = scmp.ne.s32.totalorder %s109, %s111
    %p115 = scmp.eq.s32.totalorder %s12, 0
    %p116 = por %p114, %p115
    %p117 = scmp.ne.s32.totalorder %s109, %s111
    %p118 = scmp.eq.s32.totalorder %s17, 1
    %p119 = por %p117, %p118
    %p120 = scmp.ne.s32.totalorder %s111, %s112
    %p121 = scmp.eq.s32.totalorder %s17, 0
    %p122 = por %p120, %p121
    %p123 = scmp.ne.s32.totalorder %s111, %s112
    %p124 = scmp.eq.s32.totalorder %s18, 1
    %p125 = por %p123, %p124
    %p127 = scmp.ne.s32.totalorder %s112, %s126
    %p128 = scmp.eq.s32.totalorder %s18, 0
    %p129 = por %p127, %p128
    %s131 = sadd.s32 %s130, 1
    %p134 = scmp.eq.s32.totalorder %s12, 1
    %p135 = scmp.ne.s32.totalorder %s130, %s132
    %p136 = scmp.eq.s32.totalorder %s12, 0
    %p137 = por %p135, %p136
    %p138 = scmp.ne.s32.totalorder %s130, %s132
    %p139 = scmp.eq.s32.totalorder %s17, 1
    %p140 = por %p138, %p139
    %p141 = scmp.ne.s32.totalorder %s132, %s133
    %p142 = scmp.eq.s32.totalorder %s17, 0
    %p143 = por %p141, %p142
    %p144 = scmp.ne.s32.totalorder %s132, %s133
    %p145 = scmp.eq.s32.totalorder %s18, 1
    %p146 = por %p144, %p145
    %p148 = scmp.ne.s32.totalorder %s133, %s147
    %p149 = scmp.eq.s32.totalorder %s18, 0
    %p150 = por %p148, %p149
    %s151 = ssub.s32 %s12, %s19
    %p152 = scmp.eq.s32.totalorder %s151, 0
    %s154 = sadd.s32 %s153, 1
    %s155 = scalar_select %p152, %s153, %s154
    %p158 = pneg %p152
    %p159 = scmp.eq.s32.totalorder %s12, 1
    %p160 = por %p158, %p159
    %p161 = scmp.ne.s32.totalorder %s153, %s156
    %p162 = scmp.eq.s32.totalorder %s12, 0
    %p163 = por %p161, %p162
    %p164 = scmp.ne.s32.totalorder %s153, %s156
    %p165 = scmp.eq.s32.totalorder %s17, 1
    %p166 = por %p164, %p165
    %p167 = scmp.ne.s32.totalorder %s156, %s157
    %p168 = scmp.eq.s32.totalorder %s17, 0
    %p169 = por %p167, %p168
    %p170 = scmp.ne.s32.totalorder %s156, %s157
    %p171 = scmp.eq.s32.totalorder %s18, 1
    %p172 = por %p170, %p171
    %p174 = scmp.ne.s32.totalorder %s157, %s173
    %p175 = scmp.eq.s32.totalorder %s18, 0
    %p176 = por %p174, %p175
    %p177 = scmp.le.s32.totalorder 1, %s12
    %p178 = scmp.lt.s32.totalorder %s12, 3
    %p179 = pnand %p177, %p178
    %p180 = pneg %p179
    // Predicated region
    $region9: #{downsampling_forward.1} parent=5 // pred_check
      _
    $region10: #{downsampling_forward.1} parent=5 // pred_check_branch
      %182 = sbr.rel (%p179) target = $region12
    $region11: #{downsampling_forward.1} parent=5 // pred_region
      %s183 = ssub.s32 %s12, 1
      // Predicated region
      $region13: #{downsampling_forward.1} parent=11 // pred_check
        %p184 = pneg %p59
      $region14: #{downsampling_forward.1} parent=11 // pred_check_branch
        %186 = sbr.rel (%p184) target = $region16
      $region15: #{downsampling_forward.1} parent=11 // pred_region
        _
      $region16: #{downsampling_forward.1} parent=11 // pred_fallthru
        _
      // Predicated region
      $region17: #{downsampling_forward.1} parent=11 // pred_check
        %p187 = pneg %p80
      $region18: #{downsampling_forward.1} parent=11 // pred_check_branch
        %189 = sbr.rel (%p187) target = $region20
      $region19: #{downsampling_forward.1} parent=11 // pred_region
        _
      $region20: #{downsampling_forward.1} parent=11 // pred_fallthru
        _
      // Predicated region
      $region21: #{downsampling_forward.1} parent=11 // pred_check
        %p190 = pneg %p101
      $region22: #{downsampling_forward.1} parent=11 // pred_check_branch
        %192 = sbr.rel (%p190) target = $region24
      $region23: #{downsampling_forward.1} parent=11 // pred_region
        _
      $region24: #{downsampling_forward.1} parent=11 // pred_fallthru
        _
      // Predicated region
      $region25: #{downsampling_forward.1} parent=11 // pred_check
        %p193 = pneg %p122
      $region26: #{downsampling_forward.1} parent=11 // pred_check_branch
        %195 = sbr.rel (%p193) target = $region28
      $region27: #{downsampling_forward.1} parent=11 // pred_region
        _
      $region28: #{downsampling_forward.1} parent=11 // pred_fallthru
        _
      // Predicated region
      $region29: #{downsampling_forward.1} parent=11 // pred_check
        %p196 = pneg %p143
      $region30: #{downsampling_forward.1} parent=11 // pred_check_branch
        %198 = sbr.rel (%p196) target = $region32
      $region31: #{downsampling_forward.1} parent=11 // pred_region
        _
      $region32: #{downsampling_forward.1} parent=11 // pred_fallthru
        _
    $region12: #{downsampling_forward.1} parent=5 // pred_fallthru
      _
    %p199 = scmp.lt.s32.totalorder %s12, 2
    // Predicated region
    $region33: #{downsampling_forward.1} parent=5 // pred_check
      %p200 = pneg %p199
    $region34: #{downsampling_forward.1} parent=5 // pred_check_branch
      %202 = sbr.rel (%p200) target = $region36
    $region35: #{downsampling_forward.1} parent=5 // pred_region
      // Predicated region
      $region37: #{downsampling_forward.1} parent=35 // pred_check
        %p203 = pneg %p32
      $region38: #{downsampling_forward.1} parent=35 // pred_check_branch
        %205 = sbr.rel (%p203) target = $region40
      $region39: #{downsampling_forward.1} parent=35 // pred_region
        %p206 = scmp.lt.s32.totalorder %s12, 1
        %s207 = scalar_select %p206, %s12, 1
        %s208 = smul.addr %s207, 8
        %s209 = smul.addr %s208, 8
        %s210 = scalar_lea.vmem %s0, %s209
      $region40: #{downsampling_forward.1} parent=35 // pred_fallthru
        _
    $region36: #{downsampling_forward.1} parent=5 // pred_fallthru
      _
    %p211 = scmp.le.s32.totalorder 1, %s12
    %p212 = scmp.lt.s32.totalorder %s12, 3
    %p213 = pnand %p211, %p212
    %p214 = pneg %p213
    // Predicated region
    $region41: #{downsampling_forward.1} parent=5 // pred_check
      _
    $region42: #{downsampling_forward.1} parent=5 // pred_check_branch
      %216 = sbr.rel (%p213) target = $region44
    $region43: #{downsampling_forward.1} parent=5 // pred_region
      %s217 = ssub.s32 %s12, 1
      %p218 = scmp.lt.s32.totalorder %s17, 1
      %s219 = scalar_select %p218, %s17, 1
      %s220 = smul.addr %s219, 8
      %s221 = smul.addr %s220, 8
      %s222 = scalar_lea.vmem %s0, %s221
      %p223 = pneg %p38
      %p224 = pneg %p35
      %p225 = pneg %p59
      %p226 = pneg %p56
      %p227 = pneg %p80
      %p228 = pneg %p77
      %p229 = pneg %p101
      %p230 = pneg %p98
      %p231 = pneg %p122
      %p232 = pneg %p119
      %p233 = pneg %p143
      %p234 = pneg %p140
      %p235 = pneg %p169
      %p236 = pneg %p166
      %p237 = scmp.lt.s32.totalorder %s17, 1
      %s238 = scalar_select %p237, %s17, 1
      %s239 = smul.addr %s238, 2
      %s240 = smul.addr %s239, 8
      %s241 = scalar_lea.vmem %s6, %s240
      %p242 = scmp.lt.s32.totalorder %s17, 1
      %s243 = scalar_select %p242, %s17, 1
      %s244 = smul.addr %s243, 8
      %s245 = smul.addr %s244, 8
      %s246 = scalar_lea.vmem %s0, %s245
      %p247 = scmp.lt.s32.totalorder %s17, 1
      %s248 = scalar_select %p247, %s17, 1
      %s249 = smul.addr %s248, 2
      %s250 = smul.addr %s249, 8
      %s251 = scalar_lea.vmem %s6, %s250
      %v252 = vld [vmem:[%s5] sm:$0x3]
      %v253 = vld [vmem:[%s1] sm:$0xf]
      %v254 = vld [vmem:[%s246] sm:$0xff]
      %v255 = vld [vmem:[%s246 + $0x8] sm:$0xff]
      %v256 = vld [vmem:[%s246 + $0x10] sm:$0xff]
      %v257 = vld [vmem:[%s246 + $0x18] sm:$0xff]
      %v258 = vld [vmem:[%s246 + $0x20] sm:$0xff]
      %v259 = vld [vmem:[%s246 + $0x28] sm:$0xff]
      %v260 = vld [vmem:[%s246 + $0x30] sm:$0xff]
      %v261 = vld [vmem:[%s246 + $0x38] sm:$0xff]
      %v262 = vld [vmem:[%s2] sm:$0xf]
      %264 = vset.pattern.permute.xlu0 0
      %265 = vperm.xlu0 %264, %v262
      %v266 = vpop.permute.xlu0 %265
      %vm268 = vcmask 261120
      %v270 = vsel %vm268, %v253, 0
      %272 = vmatprep.subr.mxu0 0.0
      %273 = vmatpush1.msra.mxu0 0.0
      %274 = vmatprep.subr.mxu0 0.0
      %275 = vmatpush1.msra.mxu0 0.0
      %276 = vmatprep.subr.mxu0 0.0
      %277 = vmatpush1.msra.mxu0 0.0
      %278 = vmatprep.subr.mxu0 0.0
      %279 = vmatpush1.msra.mxu0 0.0
      %280 = vmatprep.subr.mxu0 0.0
      %281 = vmatpush1.msra.mxu0 0.0
      %282 = vmatprep.subr.mxu0 0.0
      %283 = vmatpush1.msra.mxu0 0.0
      %284 = vmatprep.subr.mxu0 0.0
      %285 = vmatpush1.msra.mxu0 0.0
      %286 = vmatprep.subr.mxu0 0.0
      %287 = vmatpush1.msra.mxu0 0.0
      %288 = vmatprep.subr.mxu0 0.0
      %289 = vmatpush1.msra.mxu0 0.0
      %290 = vmatprep.subr.mxu0 0.0
      %291 = vmatpush1.msra.mxu0 0.0
      %292 = vmatprep.subr.mxu0 0.0
      %293 = vmatpush1.msra.mxu0 0.0
      %294 = vmatprep.subr.mxu0 0.0
      %295 = vmatpush1.msra.mxu0 0.0
      %296 = vmatprep.subr.mxu0 %v261
      %297 = vmatpush1.msra.mxu0 %v260
      %298 = vmatprep.subr.mxu0 %v259
      %299 = vmatpush1.msra.mxu0 %v258
      %300 = vmatprep.subr.mxu0 %v257
      %301 = vmatpush1.msra.mxu0 %v256
      %302 = vmatprep.subr.mxu0 %v255
      %303 = vmatpush1.msra.mxu0 %v254
      %304 = vmatprep.subr.mxu0 0.0
      %305 = vmatpush2.msra.mxu0 0.0
      %306 = vmatprep.subr.mxu0 0.0
      %307 = vmatpush2.msra.mxu0 0.0
      %308 = vmatprep.subr.mxu0 0.0
      %309 = vmatpush2.msra.mxu0 0.0
      %310 = vmatprep.subr.mxu0 0.0
      %311 = vmatpush2.msra.mxu0 0.0
      %312 = vmatprep.subr.mxu0 0.0
      %313 = vmatpush2.msra.mxu0 0.0
      %314 = vmatprep.subr.mxu0 0.0
      %315 = vmatpush2.msra.mxu0 0.0
      %316 = vmatprep.subr.mxu0 0.0
      %317 = vmatpush2.msra.mxu0 0.0
      %318 = vmatprep.subr.mxu0 0.0
      %319 = vmatpush2.msra.mxu0 0.0
      %320 = vmatprep.subr.mxu0 0.0
      %321 = vmatpush2.msra.mxu0 0.0
      %322 = vmatprep.subr.mxu0 0.0
      %323 = vmatpush2.msra.mxu0 0.0
      %324 = vmatprep.subr.mxu0 0.0
      %325 = vmatpush2.msra.mxu0 0.0
      %326 = vmatprep.subr.mxu0 0.0
      %327 = vmatpush2.msra.mxu0 0.0
      %328 = vmatprep.subr.mxu0 0.0
      %329 = vmatpush2.msra.mxu0 0.0
      %330 = vmatprep.subr.mxu0 0.0
      %331 = vmatpush2.msra.mxu0 0.0
      %332 = vmatprep.subr.mxu0 0.0
      %333 = vmatpush2.msra.mxu0 0.0
      %334 = vmatprep.subr.mxu0 0.0
      %335 = vmatpush2.msra.mxu0 0.0
      %336 = vmatprep.mubr.f32.mxu0 0.0
      %337 = vmatmul.mubr.f32.gmra.mxu0 %v270
      %v338 = vpop.f32.mrf.mxu0
      %v339 = vadd.f32 %v266, %v338
      %v340 = vpop.f32.mrf.mxu0
      %v341 = vadd.f32 %v266, %v340
      %342 = vdwg.mxu0
      %v344 = vlaneseq
      %v345 = vshrl.u32 %v344, 7
      %v346 = vsub.s32 0, %v345
      %v347 = vrot.slane %v252, %v346
      %v348 = vlaneseq
      %v349 = vshrl.u32 %v348, 7
      %v350 = vsub.s32 1, %v349
      %v351 = vrot.slane %v252, %v350
      %v354 = vmul.f32 %v339, %v347
      %v355 = vmul.f32 %v341, %v351
      %v356 = vld [vmem:[%s3] sm:$0xf]
      %359 = vrot.lane.b32.xlu0 %v354, 88
      %v360 = vpop.permute.xlu0 %359
      %361 = vrot.lane.b32.xlu0 %v355, 88
      %v362 = vpop.permute.xlu0 %361
      %vm363 = vcmask 719872
      %v364 = vsel %vm363, %v360, %v362
      %v368 = vsel %vm363, %v355, %v360
      %v370 = vrot.slane %v368, 4
      %v371 = vrot.slane %v364, 4
      %v372 = vrot.slane %v362, 4
      %373 = vrot.lane.b32.xlu0 %v370, 127
      %v374 = vpop.permute.xlu0 %373
      %375 = vrot.lane.b32.xlu0 %v371, 127
      %v376 = vpop.permute.xlu0 %375
      %377 = vrot.lane.b32.xlu0 %v372, 127
      %v378 = vpop.permute.xlu0 %377
      %vm379 = vcmask 1039360
      %v380 = vsel %vm379, %v374, %v376
      %v381 = vsel %vm379, %v376, %v378
      %385 = vrot.lane.b32.xlu0 %v368, 126
      %v386 = vpop.permute.xlu0 %385
      %387 = vrot.lane.b32.xlu0 %v364, 126
      %v388 = vpop.permute.xlu0 %387
      %389 = vrot.lane.b32.xlu0 %v362, 126
      %v390 = vpop.permute.xlu0 %389
      %vm391 = vcmask 1031168
      %v392 = vsel %vm391, %v386, %v388
      %v393 = vsel %vm391, %v388, %v390
      %397 = vrot.lane.b32.xlu0 %v370, 122
      %v398 = vpop.permute.xlu0 %397
      %399 = vrot.lane.b32.xlu0 %v371, 122
      %v400 = vpop.permute.xlu0 %399
      %401 = vrot.lane.b32.xlu0 %v372, 122
      %v402 = vpop.permute.xlu0 %401
      %vm403 = vcmask 998400
      %v404 = vsel %vm403, %v398, %v400
      %v405 = vsel %vm403, %v400, %v402
      %409 = vrot.lane.b32.xlu0 %v368, 121
      %v410 = vpop.permute.xlu0 %409
      %411 = vrot.lane.b32.xlu0 %v364, 121
      %v412 = vpop.permute.xlu0 %411
      %413 = vrot.lane.b32.xlu0 %v362, 121
      %v414 = vpop.permute.xlu0 %413
      %vm415 = vcmask 990208
      %v416 = vsel %vm415, %v410, %v412
      %v417 = vsel %vm415, %v412, %v414
      %421 = vrot.lane.b32.xlu0 %v370, 120
      %v422 = vpop.permute.xlu0 %421
      %423 = vrot.lane.b32.xlu0 %v371, 120
      %v424 = vpop.permute.xlu0 %423
      %425 = vrot.lane.b32.xlu0 %v372, 120
      %v426 = vpop.permute.xlu0 %425
      %vm427 = vcmask 982016
      %v428 = vsel %vm427, %v422, %v424
      %v429 = vsel %vm427, %v424, %v426
      %433 = vrot.lane.b32.xlu0 %v368, 116
      %v434 = vpop.permute.xlu0 %433
      %435 = vrot.lane.b32.xlu0 %v364, 116
      %v436 = vpop.permute.xlu0 %435
      %437 = vrot.lane.b32.xlu0 %v362, 116
      %v438 = vpop.permute.xlu0 %437
      %vm439 = vcmask 949248
      %v440 = vsel %vm439, %v434, %v436
      %v441 = vsel %vm439, %v436, %v438
      %445 = vrot.lane.b32.xlu0 %v370, 115
      %v446 = vpop.permute.xlu0 %445
      %447 = vrot.lane.b32.xlu0 %v371, 115
      %v448 = vpop.permute.xlu0 %447
      %449 = vrot.lane.b32.xlu0 %v372, 115
      %v450 = vpop.permute.xlu0 %449
      %vm451 = vcmask 941056
      %v452 = vsel %vm451, %v446, %v448
      %v453 = vsel %vm451, %v448, %v450
      %457 = vrot.lane.b32.xlu0 %v368, 114
      %v458 = vpop.permute.xlu0 %457
      %459 = vrot.lane.b32.xlu0 %v364, 114
      %v460 = vpop.permute.xlu0 %459
      %461 = vrot.lane.b32.xlu0 %v362, 114
      %v462 = vpop.permute.xlu0 %461
      %vm463 = vcmask 932864
      %v464 = vsel %vm463, %v458, %v460
      %v465 = vsel %vm463, %v460, %v462
      %469 = vrot.lane.b32.xlu0 %v370, 92
      %v470 = vpop.permute.xlu0 %469
      %471 = vrot.lane.b32.xlu0 %v371, 92
      %v472 = vpop.permute.xlu0 %471
      %473 = vrot.lane.b32.xlu0 %v372, 92
      %v474 = vpop.permute.xlu0 %473
      %vm475 = vcmask 752640
      %v476 = vsel %vm475, %v470, %v472
      %v477 = vsel %vm475, %v472, %v474
      %481 = vrot.lane.b32.xlu0 %v368, 91
      %v482 = vpop.permute.xlu0 %481
      %483 = vrot.lane.b32.xlu0 %v364, 91
      %v484 = vpop.permute.xlu0 %483
      %485 = vrot.lane.b32.xlu0 %v362, 91
      %v486 = vpop.permute.xlu0 %485
      %vm487 = vcmask 744448
      %v488 = vsel %vm487, %v482, %v484
      %v489 = vsel %vm487, %v484, %v486
      %493 = vrot.lane.b32.xlu0 %v370, 90
      %v494 = vpop.permute.xlu0 %493
      %495 = vrot.lane.b32.xlu0 %v371, 90
      %v496 = vpop.permute.xlu0 %495
      %497 = vrot.lane.b32.xlu0 %v372, 90
      %v498 = vpop.permute.xlu0 %497
      %vm499 = vcmask 736256
      %v500 = vsel %vm499, %v494, %v496
      %v501 = vsel %vm499, %v496, %v498
      %505 = vrot.lane.b32.xlu0 %v368, 86
      %v506 = vpop.permute.xlu0 %505
      %507 = vrot.lane.b32.xlu0 %v364, 86
      %v508 = vpop.permute.xlu0 %507
      %509 = vrot.lane.b32.xlu0 %v362, 86
      %v510 = vpop.permute.xlu0 %509
      %vm511 = vcmask 703488
      %v512 = vsel %vm511, %v506, %v508
      %v513 = vsel %vm511, %v508, %v510
      %v517 = vrot.slane %v354, 4
      %518 = vrot.lane.b32.xlu0 %v517, 45
      %v519 = vpop.permute.xlu0 %518
      %520 = vrot.lane.b32.xlu0 %v370, 45
      %v521 = vpop.permute.xlu0 %520
      %vm522 = vcmask 367616
      %v523 = vsel %vm522, %v519, %v521
      %527 = vrot.lane.b32.xlu0 %v354, 44
      %v528 = vpop.permute.xlu0 %527
      %529 = vrot.lane.b32.xlu0 %v368, 44
      %v530 = vpop.permute.xlu0 %529
      %vm531 = vcmask 359424
      %v532 = vsel %vm531, %v528, %v530
      %536 = vrot.lane.b32.xlu0 %v517, 40
      %v537 = vpop.permute.xlu0 %536
      %538 = vrot.lane.b32.xlu0 %v370, 40
      %v539 = vpop.permute.xlu0 %538
      %vm540 = vcmask 326656
      %v541 = vsel %vm540, %v537, %v539
      %vm545 = vcmask 1043456
      %v546 = vsel %vm545, %v368, %v380
      %v547 = vsel %vm545, %v364, %v381
      %v548 = vsel %vm545, %v362, %v378
      %v549 = vsel %vm545, %v392, %v404
      %v550 = vsel %vm545, %v393, %v405
      %v551 = vsel %vm545, %v390, %v402
      %v552 = vsel %vm545, %v416, %v428
      %v553 = vsel %vm545, %v417, %v429
      %v554 = vsel %vm545, %v414, %v426
      %v555 = vsel %vm545, %v440, %v452
      %v556 = vsel %vm545, %v441, %v453
      %v557 = vsel %vm545, %v438, %v450
      %v558 = vsel %vm545, %v464, %v476
      %v559 = vsel %vm545, %v465, %v477
      %v560 = vsel %vm545, %v462, %v474
      %v561 = vsel %vm545, %v488, %v500
      %v562 = vsel %vm545, %v489, %v501
      %v563 = vsel %vm545, %v486, %v498
      %v564 = vsel %vm545, %v512, %v519
      %v565 = vsel %vm545, %v513, %v523
      %v566 = vsel %vm545, %v510, %v521
      %v567 = vsel %vm545, %v528, %v537
      %v568 = vsel %vm545, %v532, %v541
      %v569 = vsel %vm545, %v530, %v539
      %570 = vrot.lane.b32.xlu0 %v517, 127
      %v571 = vpop.permute.xlu0 %570
      %v572 = vsel %vm379, %v571, %v374
      %575 = vrot.lane.b32.xlu0 %v354, 105
      %v576 = vpop.permute.xlu0 %575
      %577 = vrot.lane.b32.xlu0 %v368, 105
      %v578 = vpop.permute.xlu0 %577
      %vm579 = vcmask 859136
      %v580 = vsel %vm579, %v576, %v578
      %583 = vrot.lane.b32.xlu0 %v517, 104
      %v584 = vpop.permute.xlu0 %583
      %585 = vrot.lane.b32.xlu0 %v370, 104
      %v586 = vpop.permute.xlu0 %585
      %vm587 = vcmask 850944
      %v588 = vsel %vm587, %v584, %v586
      %591 = vrot.lane.b32.xlu0 %v354, 103
      %v592 = vpop.permute.xlu0 %591
      %593 = vrot.lane.b32.xlu0 %v368, 103
      %v594 = vpop.permute.xlu0 %593
      %vm595 = vcmask 842752
      %v596 = vsel %vm595, %v592, %v594
      %599 = vrot.lane.b32.xlu0 %v517, 99
      %v600 = vpop.permute.xlu0 %599
      %601 = vrot.lane.b32.xlu0 %v370, 99
      %v602 = vpop.permute.xlu0 %601
      %vm603 = vcmask 809984
      %v604 = vsel %vm603, %v600, %v602
      %607 = vrot.lane.b32.xlu0 %v354, 98
      %v608 = vpop.permute.xlu0 %607
      %609 = vrot.lane.b32.xlu0 %v368, 98
      %v610 = vpop.permute.xlu0 %609
      %vm611 = vcmask 801792
      %v612 = vsel %vm611, %v608, %v610
      %615 = vrot.lane.b32.xlu0 %v517, 97
      %v616 = vpop.permute.xlu0 %615
      %617 = vrot.lane.b32.xlu0 %v370, 97
      %v618 = vpop.permute.xlu0 %617
      %vm619 = vcmask 793600
      %v620 = vsel %vm619, %v616, %v618
      %623 = vrot.lane.b32.xlu0 %v354, 93
      %v624 = vpop.permute.xlu0 %623
      %625 = vrot.lane.b32.xlu0 %v368, 93
      %v626 = vpop.permute.xlu0 %625
      %627 = vrot.lane.b32.xlu0 %v364, 93
      %v628 = vpop.permute.xlu0 %627
      %vm629 = vcmask 760832
      %v630 = vsel %vm629, %v624, %v626
      %v631 = vsel %vm629, %v626, %v628
      %634 = vrot.lane.b32.xlu0 %v517, 92
      %v635 = vpop.permute.xlu0 %634
      %v636 = vsel %vm475, %v635, %v470
      %638 = vrot.lane.b32.xlu0 %v354, 91
      %v639 = vpop.permute.xlu0 %638
      %v640 = vsel %vm487, %v639, %v482
      %v641 = vsel %vm545, %v354, %v572
      %v642 = vsel %vm545, %v368, %v374
      %v643 = vsel %vm545, %v580, %v588
      %v644 = vsel %vm545, %v578, %v586
      %v645 = vsel %vm545, %v596, %v604
      %v646 = vsel %vm545, %v594, %v602
      %v647 = vsel %vm545, %v612, %v620
      %v648 = vsel %vm545, %v610, %v618
      %v649 = vsel %vm545, %v630, %v636
      %v650 = vsel %vm545, %v631, %v476
      %661 = vrot.lane.b32.xlu0 %v641, 39
      %v662 = vpop.permute.xlu0 %661
      %663 = vrot.lane.b32.xlu0 %v642, 39
      %v664 = vpop.permute.xlu0 %663
      %665 = vrot.lane.b32.xlu0 %v643, 39
      %v666 = vpop.permute.xlu0 %665
      %667 = vrot.lane.b32.xlu0 %v644, 39
      %v668 = vpop.permute.xlu0 %667
      %669 = vrot.lane.b32.xlu0 %v645, 39
      %v670 = vpop.permute.xlu0 %669
      %671 = vrot.lane.b32.xlu0 %v646, 39
      %v672 = vpop.permute.xlu0 %671
      %673 = vrot.lane.b32.xlu0 %v647, 39
      %v674 = vpop.permute.xlu0 %673
      %675 = vrot.lane.b32.xlu0 %v648, 39
      %v676 = vpop.permute.xlu0 %675
      %677 = vrot.lane.b32.xlu0 %v649, 39
      %v678 = vpop.permute.xlu0 %677
      %679 = vrot.lane.b32.xlu0 %v650, 39
      %v680 = vpop.permute.xlu0 %679
      %681 = vrot.lane.b32.xlu0 %v640, 39
      %v682 = vpop.permute.xlu0 %681
      %683 = vrot.lane.b32.xlu0 %v488, 39
      %v684 = vpop.permute.xlu0 %683
      %vm685 = vcmask 318464
      %v686 = vsel %vm685, %v662, %v664
      %v687 = vsel %vm685, %v666, %v668
      %v688 = vsel %vm685, %v670, %v672
      %v689 = vsel %vm685, %v674, %v676
      %v690 = vsel %vm685, %v678, %v680
      %v691 = vsel %vm685, %v682, %v684
      %716 = vrot.lane.b32.xlu0 %v546, 83
      %v717 = vpop.permute.xlu0 %716
      %718 = vrot.lane.b32.xlu0 %v547, 83
      %v719 = vpop.permute.xlu0 %718
      %720 = vrot.lane.b32.xlu0 %v548, 83
      %v721 = vpop.permute.xlu0 %720
      %722 = vrot.lane.b32.xlu0 %v549, 83
      %v723 = vpop.permute.xlu0 %722
      %724 = vrot.lane.b32.xlu0 %v550, 83
      %v725 = vpop.permute.xlu0 %724
      %726 = vrot.lane.b32.xlu0 %v551, 83
      %v727 = vpop.permute.xlu0 %726
      %728 = vrot.lane.b32.xlu0 %v552, 83
      %v729 = vpop.permute.xlu0 %728
      %730 = vrot.lane.b32.xlu0 %v553, 83
      %v731 = vpop.permute.xlu0 %730
      %732 = vrot.lane.b32.xlu0 %v554, 83
      %v733 = vpop.permute.xlu0 %732
      %734 = vrot.lane.b32.xlu0 %v555, 83
      %v735 = vpop.permute.xlu0 %734
      %736 = vrot.lane.b32.xlu0 %v556, 83
      %v737 = vpop.permute.xlu0 %736
      %738 = vrot.lane.b32.xlu0 %v557, 83
      %v739 = vpop.permute.xlu0 %738
      %740 = vrot.lane.b32.xlu0 %v558, 83
      %v741 = vpop.permute.xlu0 %740
      %742 = vrot.lane.b32.xlu0 %v559, 83
      %v743 = vpop.permute.xlu0 %742
      %744 = vrot.lane.b32.xlu0 %v560, 83
      %v745 = vpop.permute.xlu0 %744
      %746 = vrot.lane.b32.xlu0 %v561, 83
      %v747 = vpop.permute.xlu0 %746
      %748 = vrot.lane.b32.xlu0 %v562, 83
      %v749 = vpop.permute.xlu0 %748
      %750 = vrot.lane.b32.xlu0 %v563, 83
      %v751 = vpop.permute.xlu0 %750
      %752 = vrot.lane.b32.xlu0 %v564, 83
      %v753 = vpop.permute.xlu0 %752
      %754 = vrot.lane.b32.xlu0 %v565, 83
      %v755 = vpop.permute.xlu0 %754
      %756 = vrot.lane.b32.xlu0 %v566, 83
      %v757 = vpop.permute.xlu0 %756
      %758 = vrot.lane.b32.xlu0 %v567, 83
      %v759 = vpop.permute.xlu0 %758
      %760 = vrot.lane.b32.xlu0 %v568, 83
      %v761 = vpop.permute.xlu0 %760
      %762 = vrot.lane.b32.xlu0 %v569, 83
      %v763 = vpop.permute.xlu0 %762
      %764 = vrot.lane.b32.xlu0 %v662, 83
      %v765 = vpop.permute.xlu0 %764
      %766 = vrot.lane.b32.xlu0 %v686, 83
      %v767 = vpop.permute.xlu0 %766
      %768 = vrot.lane.b32.xlu0 %v664, 83
      %v769 = vpop.permute.xlu0 %768
      %770 = vrot.lane.b32.xlu0 %v666, 83
      %v771 = vpop.permute.xlu0 %770
      %772 = vrot.lane.b32.xlu0 %v687, 83
      %v773 = vpop.permute.xlu0 %772
      %774 = vrot.lane.b32.xlu0 %v668, 83
      %v775 = vpop.permute.xlu0 %774
      %776 = vrot.lane.b32.xlu0 %v670, 83
      %v777 = vpop.permute.xlu0 %776
      %778 = vrot.lane.b32.xlu0 %v688, 83
      %v779 = vpop.permute.xlu0 %778
      %780 = vrot.lane.b32.xlu0 %v672, 83
      %v781 = vpop.permute.xlu0 %780
      %782 = vrot.lane.b32.xlu0 %v674, 83
      %v783 = vpop.permute.xlu0 %782
      %784 = vrot.lane.b32.xlu0 %v689, 83
      %v785 = vpop.permute.xlu0 %784
      %786 = vrot.lane.b32.xlu0 %v676, 83
      %v787 = vpop.permute.xlu0 %786
      %788 = vrot.lane.b32.xlu0 %v678, 83
      %v789 = vpop.permute.xlu0 %788
      %790 = vrot.lane.b32.xlu0 %v690, 83
      %v791 = vpop.permute.xlu0 %790
      %792 = vrot.lane.b32.xlu0 %v680, 83
      %v793 = vpop.permute.xlu0 %792
      %794 = vrot.lane.b32.xlu0 %v682, 83
      %v795 = vpop.permute.xlu0 %794
      %796 = vrot.lane.b32.xlu0 %v691, 83
      %v797 = vpop.permute.xlu0 %796
      %798 = vrot.lane.b32.xlu0 %v684, 83
      %v799 = vpop.permute.xlu0 %798
      %vm800 = vcmask 678912
      %v801 = vsel %vm800, %v717, %v719
      %v802 = vsel %vm800, %v719, %v721
      %v803 = vsel %vm800, %v723, %v725
      %v804 = vsel %vm800, %v725, %v727
      %v805 = vsel %vm800, %v729, %v731
      %v806 = vsel %vm800, %v731, %v733
      %v807 = vsel %vm800, %v735, %v737
      %v808 = vsel %vm800, %v737, %v739
      %v809 = vsel %vm800, %v741, %v743
      %v810 = vsel %vm800, %v743, %v745
      %v811 = vsel %vm800, %v747, %v749
      %v812 = vsel %vm800, %v749, %v751
      %v813 = vsel %vm800, %v753, %v755
      %v814 = vsel %vm800, %v755, %v757
      %v815 = vsel %vm800, %v759, %v761
      %v816 = vsel %vm800, %v761, %v763
      %v817 = vsel %vm800, %v765, %v767
      %v818 = vsel %vm800, %v767, %v769
      %v819 = vsel %vm800, %v771, %v773
      %v820 = vsel %vm800, %v773, %v775
      %v821 = vsel %vm800, %v777, %v779
      %v822 = vsel %vm800, %v779, %v781
      %v823 = vsel %vm800, %v783, %v785
      %v824 = vsel %vm800, %v785, %v787
      %v825 = vsel %vm800, %v789, %v791
      %v826 = vsel %vm800, %v791, %v793
      %v827 = vsel %vm800, %v795, %v797
      %v828 = vsel %vm800, %v797, %v799
      %vm855 = vcmask 883712
      %v857 = vsel %vm855, %v356, 0
      %v859 = vsel %vm545, %v827, 0
      %v861 = vsel %vm545, %v828, 0
      %863 = vmatprep.subr.mxu0 0.0
      %864 = vmatpush1.msra.mxu0 0.0
      %865 = vmatprep.subr.mxu0 0.0
      %866 = vmatpush1.msra.mxu0 0.0
      %867 = vmatprep.subr.mxu0 %v861
      %868 = vmatpush1.msra.mxu0 %v859
      %869 = vmatprep.subr.mxu0 %v826
      %870 = vmatpush1.msra.mxu0 %v825
      %871 = vmatprep.subr.mxu0 %v824
      %872 = vmatpush1.msra.mxu0 %v823
      %873 = vmatprep.subr.mxu0 %v822
      %874 = vmatpush1.msra.mxu0 %v821
      %875 = vmatprep.subr.mxu0 %v820
      %876 = vmatpush1.msra.mxu0 %v819
      %877 = vmatprep.subr.mxu0 %v818
      %878 = vmatpush1.msra.mxu0 %v817
      %879 = vmatprep.subr.mxu0 %v816
      %880 = vmatpush1.msra.mxu0 %v815
      %881 = vmatprep.subr.mxu0 %v814
      %882 = vmatpush1.msra.mxu0 %v813
      %883 = vmatprep.subr.mxu0 %v812
      %884 = vmatpush1.msra.mxu0 %v811
      %885 = vmatprep.subr.mxu0 %v810
      %886 = vmatpush1.msra.mxu0 %v809
      %887 = vmatprep.subr.mxu0 %v808
      %888 = vmatpush1.msra.mxu0 %v807
      %889 = vmatprep.subr.mxu0 %v806
      %890 = vmatpush1.msra.mxu0 %v805
      %891 = vmatprep.subr.mxu0 %v804
      %892 = vmatpush1.msra.mxu0 %v803
      %893 = vmatprep.subr.mxu0 %v802
      %894 = vmatpush1.msra.mxu0 %v801
      %895 = vmatprep.subr.mxu0 0.0
      %896 = vmatpush2.msra.mxu0 0.0
      %897 = vmatprep.subr.mxu0 0.0
      %898 = vmatpush2.msra.mxu0 0.0
      %899 = vmatprep.subr.mxu0 0.0
      %900 = vmatpush2.msra.mxu0 0.0
      %901 = vmatprep.subr.mxu0 0.0
      %902 = vmatpush2.msra.mxu0 0.0
      %903 = vmatprep.subr.mxu0 0.0
      %904 = vmatpush2.msra.mxu0 0.0
      %905 = vmatprep.subr.mxu0 0.0
      %906 = vmatpush2.msra.mxu0 0.0
      %907 = vmatprep.subr.mxu0 0.0
      %908 = vmatpush2.msra.mxu0 0.0
      %909 = vmatprep.subr.mxu0 0.0
      %910 = vmatpush2.msra.mxu0 0.0
      %911 = vmatprep.subr.mxu0 0.0
      %912 = vmatpush2.msra.mxu0 0.0
      %913 = vmatprep.subr.mxu0 0.0
      %914 = vmatpush2.msra.mxu0 0.0
      %915 = vmatprep.subr.mxu0 0.0
      %916 = vmatpush2.msra.mxu0 0.0
      %917 = vmatprep.subr.mxu0 0.0
      %918 = vmatpush2.msra.mxu0 0.0
      %919 = vmatprep.subr.mxu0 0.0
      %920 = vmatpush2.msra.mxu0 0.0
      %921 = vmatprep.subr.mxu0 0.0
      %922 = vmatpush2.msra.mxu0 0.0
      %923 = vmatprep.subr.mxu0 0.0
      %924 = vmatpush2.msra.mxu0 0.0
      %925 = vmatprep.subr.mxu0 0.0
      %926 = vmatpush2.msra.mxu0 0.0
      %927 = vmatprep.mubr.f32.mxu0 0.0
      %928 = vmatmul.mubr.f32.gmra.mxu0 %v857
      %v929 = vpop.f32.mrf.mxu0
      %v930 = vadd.f32 0.0, %v929
      %v931 = vpop.f32.mrf.mxu0
      %v932 = vadd.f32 0.0, %v931
      %933 = vdwg.mxu0
      %v934 = vmul.f32 %v930, %v347
      %v935 = vmul.f32 %v932, %v351
      %v936 = vsel %vm545, %v934, 0.0
      %vm937 = vcmask 715776
      %v938 = vsel %vm937, %v935, 0.0
      %v939 = vadd.f32 %v936, %v938
      %940 = vadd.xlane.f32.xlu0 %v939
      %v941 = vpop.xlane.xlu0 %940
      %v942 = vmul.f32 %v941, 0.015625
      %v943 = vsub.f32 %v930, %v942
      %v944 = vsub.f32 %v932, %v942
      %v945 = vmul.f32 %v943, %v943
      %v946 = vmul.f32 %v944, %v944
      %v947 = vmul.f32 %v945, %v347
      %v948 = vmul.f32 %v946, %v351
      %v949 = vsel %vm545, %v947, 0.0
      %v950 = vsel %vm937, %v948, 0.0
      %v951 = vadd.f32 %v949, %v950
      %952 = vadd.xlane.f32.xlu0 %v951
      %v953 = vpop.xlane.xlu0 %952
      %v954 = vmul.f32 %v953, 0.015625
      %v955 = vadd.f32 %v954, 1e-05
      %v956 = vrsqrt.pop %v955
      %v957 = vmul.f32 %v943, %v956
      %v958 = vmul.f32 %v944, %v956
      %v959 = vmul.f32 %v957, 0.01
      %v960 = vmul.f32 %v958, 0.01
      %v961 = vmax.f32 %v957, %v959
      %v962 = vmax.f32 %v958, %v960
      %v963 = vmul.f32 %v961, %v347
      %v964 = vmul.f32 %v962, %v351
      %v965 = vld [vmem:[%s4] sm:$0xff]
      %968 = vrot.lane.b32.xlu0 %v963, 88
      %v969 = vpop.permute.xlu0 %968
      %970 = vrot.lane.b32.xlu0 %v964, 88
      %v971 = vpop.permute.xlu0 %970
      %v972 = vsel %vm363, %v969, %v971
      %v976 = vsel %vm363, %v964, %v969
      %v978 = vrot.slane %v976, 4
      %v979 = vrot.slane %v972, 4
      %v980 = vrot.slane %v971, 4
      %981 = vrot.lane.b32.xlu0 %v978, 127
      %v982 = vpop.permute.xlu0 %981
      %983 = vrot.lane.b32.xlu0 %v979, 127
      %v984 = vpop.permute.xlu0 %983
      %985 = vrot.lane.b32.xlu0 %v980, 127
      %v986 = vpop.permute.xlu0 %985
      %v987 = vsel %vm379, %v982, %v984
      %v988 = vsel %vm379, %v984, %v986
      %992 = vrot.lane.b32.xlu0 %v976, 126
      %v993 = vpop.permute.xlu0 %992
      %994 = vrot.lane.b32.xlu0 %v972, 126
      %v995 = vpop.permute.xlu0 %994
      %996 = vrot.lane.b32.xlu0 %v971, 126
      %v997 = vpop.permute.xlu0 %996
      %v998 = vsel %vm391, %v993, %v995
      %v999 = vsel %vm391, %v995, %v997
      %1003 = vrot.lane.b32.xlu0 %v978, 122
      %v1004 = vpop.permute.xlu0 %1003
      %1005 = vrot.lane.b32.xlu0 %v979, 122
      %v1006 = vpop.permute.xlu0 %1005
      %1007 = vrot.lane.b32.xlu0 %v980, 122
      %v1008 = vpop.permute.xlu0 %1007
      %v1009 = vsel %vm403, %v1004, %v1006
      %v1010 = vsel %vm403, %v1006, %v1008
      %1014 = vrot.lane.b32.xlu0 %v976, 121
      %v1015 = vpop.permute.xlu0 %1014
      %1016 = vrot.lane.b32.xlu0 %v972, 121
      %v1017 = vpop.permute.xlu0 %1016
      %1018 = vrot.lane.b32.xlu0 %v971, 121
      %v1019 = vpop.permute.xlu0 %1018
      %v1020 = vsel %vm415, %v1015, %v1017
      %v1021 = vsel %vm415, %v1017, %v1019
      %1025 = vrot.lane.b32.xlu0 %v978, 120
      %v1026 = vpop.permute.xlu0 %1025
      %1027 = vrot.lane.b32.xlu0 %v979, 120
      %v1028 = vpop.permute.xlu0 %1027
      %1029 = vrot.lane.b32.xlu0 %v980, 120
      %v1030 = vpop.permute.xlu0 %1029
      %v1031 = vsel %vm427, %v1026, %v1028
      %v1032 = vsel %vm427, %v1028, %v1030
      %1036 = vrot.lane.b32.xlu0 %v976, 116
      %v1037 = vpop.permute.xlu0 %1036
      %1038 = vrot.lane.b32.xlu0 %v972, 116
      %v1039 = vpop.permute.xlu0 %1038
      %1040 = vrot.lane.b32.xlu0 %v971, 116
      %v1041 = vpop.permute.xlu0 %1040
      %v1042 = vsel %vm439, %v1037, %v1039
      %v1043 = vsel %vm439, %v1039, %v1041
      %1047 = vrot.lane.b32.xlu0 %v978, 115
      %v1048 = vpop.permute.xlu0 %1047
      %1049 = vrot.lane.b32.xlu0 %v979, 115
      %v1050 = vpop.permute.xlu0 %1049
      %1051 = vrot.lane.b32.xlu0 %v980, 115
      %v1052 = vpop.permute.xlu0 %1051
      %v1053 = vsel %vm451, %v1048, %v1050
      %v1054 = vsel %vm451, %v1050, %v1052
      %1058 = vrot.lane.b32.xlu0 %v976, 114
      %v1059 = vpop.permute.xlu0 %1058
      %1060 = vrot.lane.b32.xlu0 %v972, 114
      %v1061 = vpop.permute.xlu0 %1060
      %1062 = vrot.lane.b32.xlu0 %v971, 114
      %v1063 = vpop.permute.xlu0 %1062
      %v1064 = vsel %vm463, %v1059, %v1061
      %v1065 = vsel %vm463, %v1061, %v1063
      %1069 = vrot.lane.b32.xlu0 %v978, 92
      %v1070 = vpop.permute.xlu0 %1069
      %1071 = vrot.lane.b32.xlu0 %v979, 92
      %v1072 = vpop.permute.xlu0 %1071
      %1073 = vrot.lane.b32.xlu0 %v980, 92
      %v1074 = vpop.permute.xlu0 %1073
      %v1075 = vsel %vm475, %v1070, %v1072
      %v1076 = vsel %vm475, %v1072, %v1074
      %1080 = vrot.lane.b32.xlu0 %v976, 91
      %v1081 = vpop.permute.xlu0 %1080
      %1082 = vrot.lane.b32.xlu0 %v972, 91
      %v1083 = vpop.permute.xlu0 %1082
      %1084 = vrot.lane.b32.xlu0 %v971, 91
      %v1085 = vpop.permute.xlu0 %1084
      %v1086 = vsel %vm487, %v1081, %v1083
      %v1087 = vsel %vm487, %v1083, %v1085
      %1091 = vrot.lane.b32.xlu0 %v978, 90
      %v1092 = vpop.permute.xlu0 %1091
      %1093 = vrot.lane.b32.xlu0 %v979, 90
      %v1094 = vpop.permute.xlu0 %1093
      %1095 = vrot.lane.b32.xlu0 %v980, 90
      %v1096 = vpop.permute.xlu0 %1095
      %v1097 = vsel %vm499, %v1092, %v1094
      %v1098 = vsel %vm499, %v1094, %v1096
      %1102 = vrot.lane.b32.xlu0 %v976, 86
      %v1103 = vpop.permute.xlu0 %1102
      %1104 = vrot.lane.b32.xlu0 %v972, 86
      %v1105 = vpop.permute.xlu0 %1104
      %1106 = vrot.lane.b32.xlu0 %v971, 86
      %v1107 = vpop.permute.xlu0 %1106
      %v1108 = vsel %vm511, %v1103, %v1105
      %v1109 = vsel %vm511, %v1105, %v1107
      %v1113 = vrot.slane %v963, 4
      %1114 = vrot.lane.b32.xlu0 %v1113, 45
      %v1115 = vpop.permute.xlu0 %1114
      %1116 = vrot.lane.b32.xlu0 %v978, 45
      %v1117 = vpop.permute.xlu0 %1116
      %v1118 = vsel %vm522, %v1115, %v1117
      %1122 = vrot.lane.b32.xlu0 %v963, 44
      %v1123 = vpop.permute.xlu0 %1122
      %1124 = vrot.lane.b32.xlu0 %v976, 44
      %v1125 = vpop.permute.xlu0 %1124
      %v1126 = vsel %vm531, %v1123, %v1125
      %1130 = vrot.lane.b32.xlu0 %v1113, 40
      %v1131 = vpop.permute.xlu0 %1130
      %1132 = vrot.lane.b32.xlu0 %v978, 40
      %v1133 = vpop.permute.xlu0 %1132
      %v1134 = vsel %vm540, %v1131, %v1133
      %v1138 = vsel %vm545, %v976, %v987
      %v1139 = vsel %vm545, %v972, %v988
      %v1140 = vsel %vm545, %v971, %v986
      %v1141 = vsel %vm545, %v998, %v1009
      %v1142 = vsel %vm545, %v999, %v1010
      %v1143 = vsel %vm545, %v997, %v1008
      %v1144 = vsel %vm545, %v1020, %v1031
      %v1145 = vsel %vm545, %v1021, %v1032
      %v1146 = vsel %vm545, %v1019, %v1030
      %v1147 = vsel %vm545, %v1042, %v1053
      %v1148 = vsel %vm545, %v1043, %v1054
      %v1149 = vsel %vm545, %v1041, %v1052
      %v1150 = vsel %vm545, %v1064, %v1075
      %v1151 = vsel %vm545, %v1065, %v1076
      %v1152 = vsel %vm545, %v1063, %v1074
      %v1153 = vsel %vm545, %v1086, %v1097
      %v1154 = vsel %vm545, %v1087, %v1098
      %v1155 = vsel %vm545, %v1085, %v1096
      %v1156 = vsel %vm545, %v1108, %v1115
      %v1157 = vsel %vm545, %v1109, %v1118
      %v1158 = vsel %vm545, %v1107, %v1117
      %v1159 = vsel %vm545, %v1123, %v1131
      %v1160 = vsel %vm545, %v1126, %v1134
      %v1161 = vsel %vm545, %v1125, %v1133
      %1162 = vrot.lane.b32.xlu0 %v1113, 127
      %v1163 = vpop.permute.xlu0 %1162
      %v1164 = vsel %vm379, %v1163, %v982
      %1167 = vrot.lane.b32.xlu0 %v963, 105
      %v1168 = vpop.permute.xlu0 %1167
      %1169 = vrot.lane.b32.xlu0 %v976, 105
      %v1170 = vpop.permute.xlu0 %1169
      %v1171 = vsel %vm579, %v1168, %v1170
      %1174 = vrot.lane.b32.xlu0 %v1113, 104
      %v1175 = vpop.permute.xlu0 %1174
      %1176 = vrot.lane.b32.xlu0 %v978, 104
      %v1177 = vpop.permute.xlu0 %1176
      %v1178 = vsel %vm587, %v1175, %v1177
      %1181 = vrot.lane.b32.xlu0 %v963, 103
      %v1182 = vpop.permute.xlu0 %1181
      %1183 = vrot.lane.b32.xlu0 %v976, 103
      %v1184 = vpop.permute.xlu0 %1183
      %v1185 = vsel %vm595, %v1182, %v1184
      %1188 = vrot.lane.b32.xlu0 %v1113, 99
      %v1189 = vpop.permute.xlu0 %1188
      %1190 = vrot.lane.b32.xlu0 %v978, 99
      %v1191 = vpop.permute.xlu0 %1190
      %v1192 = vsel %vm603, %v1189, %v1191
      %1195 = vrot.lane.b32.xlu0 %v963, 98
      %v1196 = vpop.permute.xlu0 %1195
      %1197 = vrot.lane.b32.xlu0 %v976, 98
      %v1198 = vpop.permute.xlu0 %1197
      %v1199 = vsel %vm611, %v1196, %v1198
      %1202 = vrot.lane.b32.xlu0 %v1113, 97
      %v1203 = vpop.permute.xlu0 %1202
      %1204 = vrot.lane.b32.xlu0 %v978, 97
      %v1205 = vpop.permute.xlu0 %1204
      %v1206 = vsel %vm619, %v1203, %v1205
      %1209 = vrot.lane.b32.xlu0 %v963, 93
      %v1210 = vpop.permute.xlu0 %1209
      %1211 = vrot.lane.b32.xlu0 %v976, 93
      %v1212 = vpop.permute.xlu0 %1211
      %1213 = vrot.lane.b32.xlu0 %v972, 93
      %v1214 = vpop.permute.xlu0 %1213
      %v1215 = vsel %vm629, %v1210, %v1212
      %v1216 = vsel %vm629, %v1212, %v1214
      %1219 = vrot.lane.b32.xlu0 %v1113, 92
      %v1220 = vpop.permute.xlu0 %1219
      %v1221 = vsel %vm475, %v1220, %v1070
      %1223 = vrot.lane.b32.xlu0 %v963, 91
      %v1224 = vpop.permute.xlu0 %1223
      %v1225 = vsel %vm487, %v1224, %v1081
      %v1226 = vsel %vm545, %v963, %v1164
      %v1227 = vsel %vm545, %v976, %v982
      %v1228 = vsel %vm545, %v1171, %v1178
      %v1229 = vsel %vm545, %v1170, %v1177
      %v1230 = vsel %vm545, %v1185, %v1192
      %v1231 = vsel %vm545, %v1184, %v1191
      %v1232 = vsel %vm545, %v1199, %v1206
      %v1233 = vsel %vm545, %v1198, %v1205
      %v1234 = vsel %vm545, %v1215, %v1221
      %v1235 = vsel %vm545, %v1216, %v1075
      %1246 = vrot.lane.b32.xlu0 %v1226, 39
      %v1247 = vpop.permute.xlu0 %1246
      %1248 = vrot.lane.b32.xlu0 %v1227, 39
      %v1249 = vpop.permute.xlu0 %1248
      %1250 = vrot.lane.b32.xlu0 %v1228, 39
      %v1251 = vpop.permute.xlu0 %1250
      %1252 = vrot.lane.b32.xlu0 %v1229, 39
      %v1253 = vpop.permute.xlu0 %1252
      %1254 = vrot.lane.b32.xlu0 %v1230, 39
      %v1255 = vpop.permute.xlu0 %1254
      %1256 = vrot.lane.b32.xlu0 %v1231, 39
      %v1257 = vpop.permute.xlu0 %1256
      %1258 = vrot.lane.b32.xlu0 %v1232, 39
      %v1259 = vpop.permute.xlu0 %1258
      %1260 = vrot.lane.b32.xlu0 %v1233, 39
      %v1261 = vpop.permute.xlu0 %1260
      %1262 = vrot.lane.b32.xlu0 %v1234, 39
      %v1263 = vpop.permute.xlu0 %1262
      %1264 = vrot.lane.b32.xlu0 %v1235, 39
      %v1265 = vpop.permute.xlu0 %1264
      %1266 = vrot.lane.b32.xlu0 %v1225, 39
      %v1267 = vpop.permute.xlu0 %1266
      %1268 = vrot.lane.b32.xlu0 %v1086, 39
      %v1269 = vpop.permute.xlu0 %1268
      %v1270 = vsel %vm685, %v1247, %v1249
      %v1271 = vsel %vm685, %v1251, %v1253
      %v1272 = vsel %vm685, %v1255, %v1257
      %v1273 = vsel %vm685, %v1259, %v1261
      %v1274 = vsel %vm685, %v1263, %v1265
      %v1275 = vsel %vm685, %v1267, %v1269
      %1300 = vrot.lane.b32.xlu0 %v1138, 83
      %v1301 = vpop.permute.xlu0 %1300
      %1302 = vrot.lane.b32.xlu0 %v1139, 83
      %v1303 = vpop.permute.xlu0 %1302
      %1304 = vrot.lane.b32.xlu0 %v1140, 83
      %v1305 = vpop.permute.xlu0 %1304
      %1306 = vrot.lane.b32.xlu0 %v1141, 83
      %v1307 = vpop.permute.xlu0 %1306
      %1308 = vrot.lane.b32.xlu0 %v1142, 83
      %v1309 = vpop.permute.xlu0 %1308
      %1310 = vrot.lane.b32.xlu0 %v1143, 83
      %v1311 = vpop.permute.xlu0 %1310
      %1312 = vrot.lane.b32.xlu0 %v1144, 83
      %v1313 = vpop.permute.xlu0 %1312
      %1314 = vrot.lane.b32.xlu0 %v1145, 83
      %v1315 = vpop.permute.xlu0 %1314
      %1316 = vrot.lane.b32.xlu0 %v1146, 83
      %v1317 = vpop.permute.xlu0 %1316
      %1318 = vrot.lane.b32.xlu0 %v1147, 83
      %v1319 = vpop.permute.xlu0 %1318
      %1320 = vrot.lane.b32.xlu0 %v1148, 83
      %v1321 = vpop.permute.xlu0 %1320
      %1322 = vrot.lane.b32.xlu0 %v1149, 83
      %v1323 = vpop.permute.xlu0 %1322
      %1324 = vrot.lane.b32.xlu0 %v1150, 83
      %v1325 = vpop.permute.xlu0 %1324
      %1326 = vrot.lane.b32.xlu0 %v1151, 83
      %v1327 = vpop.permute.xlu0 %1326
      %1328 = vrot.lane.b32.xlu0 %v1152, 83
      %v1329 = vpop.permute.xlu0 %1328
      %1330 = vrot.lane.b32.xlu0 %v1153, 83
      %v1331 = vpop.permute.xlu0 %1330
      %1332 = vrot.lane.b32.xlu0 %v1154, 83
      %v1333 = vpop.permute.xlu0 %1332
      %1334 = vrot.lane.b32.xlu0 %v1155, 83
      %v1335 = vpop.permute.xlu0 %1334
      %1336 = vrot.lane.b32.xlu0 %v1156, 83
      %v1337 = vpop.permute.xlu0 %1336
      %1338 = vrot.lane.b32.xlu0 %v1157, 83
      %v1339 = vpop.permute.xlu0 %1338
      %1340 = vrot.lane.b32.xlu0 %v1158, 83
      %v1341 = vpop.permute.xlu0 %1340
      %1342 = vrot.lane.b32.xlu0 %v1159, 83
      %v1343 = vpop.permute.xlu0 %1342
      %1344 = vrot.lane.b32.xlu0 %v1160, 83
      %v1345 = vpop.permute.xlu0 %1344
      %1346 = vrot.lane.b32.xlu0 %v1161, 83
      %v1347 = vpop.permute.xlu0 %1346
      %1348 = vrot.lane.b32.xlu0 %v1247, 83
      %v1349 = vpop.permute.xlu0 %1348
      %1350 = vrot.lane.b32.xlu0 %v1270, 83
      %v1351 = vpop.permute.xlu0 %1350
      %1352 = vrot.lane.b32.xlu0 %v1249, 83
      %v1353 = vpop.permute.xlu0 %1352
      %1354 = vrot.lane.b32.xlu0 %v1251, 83
      %v1355 = vpop.permute.xlu0 %1354
      %1356 = vrot.lane.b32.xlu0 %v1271, 83
      %v1357 = vpop.permute.xlu0 %1356
      %1358 = vrot.lane.b32.xlu0 %v1253, 83
      %v1359 = vpop.permute.xlu0 %1358
      %1360 = vrot.lane.b32.xlu0 %v1255, 83
      %v1361 = vpop.permute.xlu0 %1360
      %1362 = vrot.lane.b32.xlu0 %v1272, 83
      %v1363 = vpop.permute.xlu0 %1362
      %1364 = vrot.lane.b32.xlu0 %v1257, 83
      %v1365 = vpop.permute.xlu0 %1364
      %1366 = vrot.lane.b32.xlu0 %v1259, 83
      %v1367 = vpop.permute.xlu0 %1366
      %1368 = vrot.lane.b32.xlu0 %v1273, 83
      %v1369 = vpop.permute.xlu0 %1368
      %1370 = vrot.lane.b32.xlu0 %v1261, 83
      %v1371 = vpop.permute.xlu0 %1370
      %1372 = vrot.lane.b32.xlu0 %v1263, 83
      %v1373 = vpop.permute.xlu0 %1372
      %1374 = vrot.lane.b32.xlu0 %v1274, 83
      %v1375 = vpop.permute.xlu0 %1374
      %1376 = vrot.lane.b32.xlu0 %v1265, 83
      %v1377 = vpop.permute.xlu0 %1376
      %1378 = vrot.lane.b32.xlu0 %v1267, 83
      %v1379 = vpop.permute.xlu0 %1378
      %1380 = vrot.lane.b32.xlu0 %v1275, 83
      %v1381 = vpop.permute.xlu0 %1380
      %1382 = vrot.lane.b32.xlu0 %v1269, 83
      %v1383 = vpop.permute.xlu0 %1382
      %v1384 = vsel %vm800, %v1301, %v1303
      %v1385 = vsel %vm800, %v1303, %v1305
      %v1386 = vsel %vm800, %v1307, %v1309
      %v1387 = vsel %vm800, %v1309, %v1311
      %v1388 = vsel %vm800, %v1313, %v1315
      %v1389 = vsel %vm800, %v1315, %v1317
      %v1390 = vsel %vm800, %v1319, %v1321
      %v1391 = vsel %vm800, %v1321, %v1323
      %v1392 = vsel %vm800, %v1325, %v1327
      %v1393 = vsel %vm800, %v1327, %v1329
      %v1394 = vsel %vm800, %v1331, %v1333
      %v1395 = vsel %vm800, %v1333, %v1335
      %v1396 = vsel %vm800, %v1337, %v1339
      %v1397 = vsel %vm800, %v1339, %v1341
      %v1398 = vsel %vm800, %v1343, %v1345
      %v1399 = vsel %vm800, %v1345, %v1347
      %v1400 = vsel %vm800, %v1349, %v1351
      %v1401 = vsel %vm800, %v1351, %v1353
      %v1402 = vsel %vm800, %v1355, %v1357
      %v1403 = vsel %vm800, %v1357, %v1359
      %v1404 = vsel %vm800, %v1361, %v1363
      %v1405 = vsel %vm800, %v1363, %v1365
      %v1406 = vsel %vm800, %v1367, %v1369
      %v1407 = vsel %vm800, %v1369, %v1371
      %v1408 = vsel %vm800, %v1373, %v1375
      %v1409 = vsel %vm800, %v1375, %v1377
      %v1410 = vsel %vm800, %v1379, %v1381
      %v1411 = vsel %vm800, %v1381, %v1383
      %v1439 = vsel %vm855, %v965, 0
      %v1441 = vsel %vm545, %v1410, 0
      %v1443 = vsel %vm545, %v1411, 0
      %1445 = vmatprep.subr.mxu0 0.0
      %1446 = vmatpush1.msra.mxu0 0.0
      %1447 = vmatprep.subr.mxu0 0.0
      %1448 = vmatpush1.msra.mxu0 0.0
      %1449 = vmatprep.subr.mxu0 %v1443
      %1450 = vmatpush1.msra.mxu0 %v1441
      %1451 = vmatprep.subr.mxu0 %v1409
      %1452 = vmatpush1.msra.mxu0 %v1408
      %1453 = vmatprep.subr.mxu0 %v1407
      %1454 = vmatpush1.msra.mxu0 %v1406
      %1455 = vmatprep.subr.mxu0 %v1405
      %1456 = vmatpush1.msra.mxu0 %v1404
      %1457 = vmatprep.subr.mxu0 %v1403
      %1458 = vmatpush1.msra.mxu0 %v1402
      %1459 = vmatprep.subr.mxu0 %v1401
      %1460 = vmatpush1.msra.mxu0 %v1400
      %1461 = vmatprep.subr.mxu0 %v1399
      %1462 = vmatpush1.msra.mxu0 %v1398
      %1463 = vmatprep.subr.mxu0 %v1397
      %1464 = vmatpush1.msra.mxu0 %v1396
      %1465 = vmatprep.subr.mxu0 %v1395
      %1466 = vmatpush1.msra.mxu0 %v1394
      %1467 = vmatprep.subr.mxu0 %v1393
      %1468 = vmatpush1.msra.mxu0 %v1392
      %1469 = vmatprep.subr.mxu0 %v1391
      %1470 = vmatpush1.msra.mxu0 %v1390
      %1471 = vmatprep.subr.mxu0 %v1389
      %1472 = vmatpush1.msra.mxu0 %v1388
      %1473 = vmatprep.subr.mxu0 %v1387
      %1474 = vmatpush1.msra.mxu0 %v1386
      %1475 = vmatprep.subr.mxu0 %v1385
      %1476 = vmatpush1.msra.mxu0 %v1384
      %1477 = vmatprep.subr.mxu0 0.0
      %1478 = vmatpush2.msra.mxu0 0.0
      %1479 = vmatprep.subr.mxu0 0.0
      %1480 = vmatpush2.msra.mxu0 0.0
      %1481 = vmatprep.subr.mxu0 0.0
      %1482 = vmatpush2.msra.mxu0 0.0
      %1483 = vmatprep.subr.mxu0 0.0
      %1484 = vmatpush2.msra.mxu0 0.0
      %1485 = vmatprep.subr.mxu0 0.0
      %1486 = vmatpush2.msra.mxu0 0.0
      %1487 = vmatprep.subr.mxu0 0.0
      %1488 = vmatpush2.msra.mxu0 0.0
      %1489 = vmatprep.subr.mxu0 0.0
      %1490 = vmatpush2.msra.mxu0 0.0
      %1491 = vmatprep.subr.mxu0 0.0
      %1492 = vmatpush2.msra.mxu0 0.0
      %1493 = vmatprep.subr.mxu0 0.0
      %1494 = vmatpush2.msra.mxu0 0.0
      %1495 = vmatprep.subr.mxu0 0.0
      %1496 = vmatpush2.msra.mxu0 0.0
      %1497 = vmatprep.subr.mxu0 0.0
      %1498 = vmatpush2.msra.mxu0 0.0
      %1499 = vmatprep.subr.mxu0 0.0
      %1500 = vmatpush2.msra.mxu0 0.0
      %1501 = vmatprep.subr.mxu0 0.0
      %1502 = vmatpush2.msra.mxu0 0.0
      %1503 = vmatprep.subr.mxu0 0.0
      %1504 = vmatpush2.msra.mxu0 0.0
      %1505 = vmatprep.subr.mxu0 0.0
      %1506 = vmatpush2.msra.mxu0 0.0
      %1507 = vmatprep.subr.mxu0 0.0
      %1508 = vmatpush2.msra.mxu0 0.0
      %1509 = vmatprep.mubr.f32.mxu0 0.0
      %1510 = vmatmul.mubr.f32.gmra.mxu0 %v1439
      %v1511 = vpop.f32.mrf.mxu0
      %v1512 = vadd.f32 0.0, %v1511
      %v1513 = vpop.f32.mrf.mxu0
      %v1514 = vadd.f32 0.0, %v1513
      %1515 = vdwg.mxu0
      %v1516 = vmul.f32 %v1512, %v347
      %v1517 = vmul.f32 %v1514, %v351
      %v1518 = vsel %vm363, %v1517, 0.0
      %v1519 = vadd.f32 %v1516, %v1518
      %1520 = vadd.xlane.f32.xlu0 %v1519
      %v1521 = vpop.xlane.xlu0 %1520
      %v1522 = vmul.f32 %v1521, 0.015625
      %v1523 = vsub.f32 %v1512, %v1522
      %v1524 = vsub.f32 %v1514, %v1522
      %v1525 = vmul.f32 %v1523, %v1523
      %v1526 = vmul.f32 %v1524, %v1524
      %v1527 = vmul.f32 %v1525, %v347
      %v1528 = vmul.f32 %v1526, %v351
      %v1529 = vsel %vm363, %v1528, 0.0
      %v1530 = vadd.f32 %v1527, %v1529
      %1531 = vadd.xlane.f32.xlu0 %v1530
      %v1532 = vpop.xlane.xlu0 %1531
      %v1533 = vmul.f32 %v1532, 0.015625
      %v1534 = vadd.f32 %v1533, 1e-05
      %v1535 = vrsqrt.pop %v1534
      %v1536 = vmul.f32 %v1523, %v1535
      %v1537 = vmul.f32 %v1524, %v1535
      %v1538 = vmul.f32 %v1536, 0.01
      %v1539 = vmul.f32 %v1537, 0.01
      %v1540 = vmax.f32 %v1536, %v1538
      %v1541 = vmax.f32 %v1537, %v1539
      %v1542 = vmul.f32 %v1540, %v347
      %v1543 = vmul.f32 %v1541, %v351
      %1544 = vst [vmem:[%s251] sm:$0xff] %v1542
      %1545 = vst.msk [vmem:[%s251 + $0x8] sm:$0xff] %vm363, %v1543
      %p1546 = scmp.lt.s32.totalorder %s17, 1
      %s1547 = scalar_select %p1546, %s17, 1
      %s1548 = smul.addr %s1547, 2
      %s1549 = smul.addr %s1548, 8
      %s1550 = scalar_lea.vmem %s6, %s1549
      // Predicated region
      $region45: #{downsampling_forward.1} parent=43 // pred_check
        %p1551 = pneg %p166
      $region46: #{downsampling_forward.1} parent=43 // pred_check_branch
        %1553 = sbr.rel (%p1551) target = $region48
      $region47: #{downsampling_forward.1} parent=43 // pred_region
        _
      $region48: #{downsampling_forward.1} parent=43 // pred_fallthru
        _
    $region44: #{downsampling_forward.1} parent=5 // pred_fallthru
      _
    %p1554 = scmp.le.s32.totalorder 2, %s12
    // Predicated region
    $region49: #{downsampling_forward.1} parent=5 // pred_check
      %p1555 = pneg %p1554
    $region50: #{downsampling_forward.1} parent=5 // pred_check_branch
      %1557 = sbr.rel (%p1555) target = $region52
    $region51: #{downsampling_forward.1} parent=5 // pred_region
      %s1558 = ssub.s32 %s12, 2
      // Predicated region
      $region53: #{downsampling_forward.1} parent=51 // pred_check
        %p1559 = pneg %p172
      $region54: #{downsampling_forward.1} parent=51 // pred_check_branch
        %1561 = sbr.rel (%p1559) target = $region56
      $region55: #{downsampling_forward.1} parent=51 // pred_region
        %p1562 = scmp.lt.s32.totalorder %s18, 1
        %s1563 = scalar_select %p1562, %s18, 1
        %s1564 = smul.addr %s1563, 2
        %s1565 = smul.addr %s1564, 8
        %s1566 = scalar_lea.vmem %s6, %s1565
      $region56: #{downsampling_forward.1} parent=51 // pred_fallthru
        _
    $region52: #{downsampling_forward.1} parent=5 // pred_fallthru
      _
  $region6: #{downsampling_forward.1} parent=0 // loop_footer
    %s16 = sadd.s32 1, %s12
  $region7: #{downsampling_forward.1} parent=0 // loop_footer_branch
    %11 = sbr.rel target = $region3
  $region8: #{downsampling_forward.1} parent=0 // loop_exit
    _

</llo_original>
